<compile_context>
chip_gen: v7x
topology: tpu7x:2x2x1
jax: 0.10.0
libtpu: 0.0.40
codegen_flags: <defaults>
</compile_context>

<pallas_src>
import numpy as np
import jax
import jax.numpy as jnp
from jax.experimental import pallas as pl
from jax.experimental.pallas import tpu as pltpu


def _round_up(a, b):
    return (a + b - 1) // b * b


def toz_kernel(x_ref, eps_ref, o_ref):
    """One (TM, TN) output tile of the flattened (K+N, N_pad) zonotope.

    x_ref:   (K, TN)  column slice of the flattened center rows
    eps_ref: (1, TN)  column slice of (zero-padded) eps
    o_ref:   (TM, TN) output tile

      out[r, c] = x[r, c]                 for r <  K
      out[r, c] = eps[c] * (r - K == c)   for r >= K
    """
    i = pl.program_id(0)
    j = pl.program_id(1)
    TM, TN = o_ref.shape
    K = x_ref.shape[0]
    r0 = i * TM  # global row offset of this tile
    c0 = j * TN  # global col offset of this tile

    # Does this tile intersect the diagonal band (global rows K+c0 .. K+c0+TN-1)?
    has_diag = jnp.logical_and(K + c0 < r0 + TM, r0 < K + c0 + TN)
    # Does this tile contain any of the K center rows?  (r0 is a multiple of TM
    # and TM >= K, so this is only possible for the first row tile.)
    has_x = r0 < K
    interesting = jnp.logical_or(has_diag, has_x)

    @pl.when(jnp.logical_not(interesting))
    def _zero_fill():
        # Vast majority of tiles: pure zero store, no VALU work.
        o_ref[...] = jnp.zeros_like(o_ref)

    @pl.when(interesting)
    def _fill():
        row_g = jax.lax.broadcasted_iota(jnp.int32, (TM, TN), 0) + r0
        col_g = jax.lax.broadcasted_iota(jnp.int32, (TM, TN), 1) + c0
        eps_b = jnp.broadcast_to(eps_ref[...].astype(o_ref.dtype), (TM, TN))
        tile = jnp.where(row_g - K == col_g, eps_b, jnp.zeros_like(eps_b))
        if K == 1:
            # Fold the single center row into the same select: one unmasked
            # full-tile store, no partial (masked) row rewrite.
            xb = jnp.broadcast_to(x_ref[...].astype(o_ref.dtype), (TM, TN))
            o_ref[...] = jnp.where(row_g < K, xb, tile)
        else:
            o_ref[...] = tile

            @pl.when(has_x)
            def _copy_x_rows():
                o_ref[0:K, :] = x_ref[...].astype(o_ref.dtype)


def to_z(x, eps, *, tm=None, tn=None):
    """JAX wrapper reproducing ToZ.forward.

    x:   (K, *feat) float array (e.g. (1, C, H, W))
    eps: scalar or array with prod(feat) elements
    returns: (K + prod(feat), *feat)
    """
    K = x.shape[0]
    feat = x.shape[1:]
    N = int(np.prod(feat))
    M = K + N

    eps = jnp.asarray(eps, dtype=x.dtype)
    if eps.ndim == 0:
        eps = jnp.full((N,), eps, dtype=x.dtype)
    eps = eps.reshape(N)

    # Lane-dense column tiling: pad N to a multiple of 128, pick the widest
    # tile in {1024, 512, 256, 128} dividing the padded width.
    N_pad = _round_up(N, 128)
    if tn is None:
        TN = 128
        for cand in (1024, 512, 256):
            if N_pad % cand == 0:
                TN = cand
                break
    else:
        TN = tn
        assert TN % 128 == 0 and N_pad % TN == 0
    # Sublane-aligned row tiling; keep all K center rows inside one row tile.
    TM = min(256, _round_up(M, 8)) if tm is None else tm
    TM = max(TM, _round_up(K, 8))
    assert TM % 8 == 0

    x_flat = x.reshape(K, N)
    if N_pad != N:
        x_flat = jnp.pad(x_flat, ((0, 0), (0, N_pad - N)))
        eps = jnp.pad(eps, (0, N_pad - N))
    eps2d = eps.reshape(1, N_pad)

    grid = (pl.cdiv(M, TM), N_pad // TN)

    out_flat = pl.pallas_call(
        toz_kernel,
        grid=grid,
        in_specs=[
            pl.BlockSpec((K, TN), lambda i, j: (0, j)),
            pl.BlockSpec((1, TN), lambda i, j: (0, j)),
        ],
        out_specs=pl.BlockSpec((TM, TN), lambda i, j: (i, j)),
        out_shape=jax.ShapeDtypeStruct((M, N_pad), x.dtype),
        compiler_params=pltpu.CompilerParams(
            dimension_semantics=("parallel", "parallel"),
            vmem_limit_bytes=32 * 1024 * 1024,
        ),
    )(x_flat, eps2d)

    if N_pad != N:
        out_flat = out_flat[:, :N]
    return out_flat.reshape((M,) + feat)


if __name__ == "__main__":
    key = jax.random.PRNGKey(0)
    kx, ke, kx2, ke2 = jax.random.split(key, 4)

    # Test 1: K=1 center image, 4 channels, 16x16 spatial -> N=1024.
    K, C, H, W = 1, 4, 16, 16
    N = C * H * W
    x = jax.random.normal(kx, (K, C, H, W), dtype=jnp.float32)
    eps = 0.1 * jnp.abs(jax.random.normal(ke, (N,), dtype=jnp.float32)) + 0.01

    out = jax.block_until_ready(to_z(x, eps))
    ref = jnp.concatenate([x, jnp.reshape(jnp.diag(eps), (N, C, H, W))], axis=0)
    assert out.shape == (K + N, C, H, W), out.shape
    assert out.dtype == x.dtype
    np.testing.assert_allclose(np.asarray(out), np.asarray(ref), rtol=0, atol=0)

    # Test 2: same input, small tiles -> multi-band grid exercising the
    # pure-zero-fill tiles and the diagonal-band tiles.
    out_small = jax.block_until_ready(to_z(x, eps, tm=64, tn=128))
    np.testing.assert_allclose(np.asarray(out_small), np.asarray(ref), rtol=0, atol=0)

    # Test 3: feature count not a multiple of 128 (exercises the padding path).
    K2, C2, H2, W2 = 1, 3, 9, 9
    N2 = C2 * H2 * W2
    x2 = jax.random.normal(kx2, (K2, C2, H2, W2), dtype=jnp.float32)
    eps2 = 0.05 * jnp.abs(jax.random.normal(ke2, (N2,), dtype=jnp.float32)) + 0.01
    out2 = jax.block_until_ready(to_z(x2, eps2))
    ref2 = jnp.concatenate(
        [x2, jnp.reshape(jnp.diag(eps2), (N2, C2, H2, W2))], axis=0)
    np.testing.assert_allclose(np.asarray(out2), np.asarray(ref2), rtol=0, atol=0)

    print("KERNEL_OK")
</pallas_src>

<mosaic_0001>
module attributes {stable_mosaic.version = 11 : i64} {
  func.func @toz_kernel(%arg0: i32, %arg1: i32, %arg2: memref<1x1024xf32, #tpu.memory_space<vmem>>, %arg3: memref<1x1024xf32, #tpu.memory_space<vmem>>, %arg4: memref<256x1024xf32, #tpu.memory_space<vmem>>) attributes {dimension_semantics = [#tpu.dimension_semantics<parallel>, #tpu.dimension_semantics<parallel>], iteration_bounds = array<i64: 5, 1>, scalar_prefetch = 0 : i64, scratch_operands = 0 : i64, tpu.core_type = #tpu.core_type<tc>, window_params = [{transform_indices = @transform_0, window_bounds = array<i64: 1, 1024>}, {transform_indices = @transform_1, window_bounds = array<i64: 1, 1024>}, {transform_indices = @transform_2, window_bounds = array<i64: 256, 1024>}]} {
    %c256_i32 = arith.constant 256 : i32
    %0 = arith.muli %arg0, %c256_i32 : i32
    %c1024_i32 = arith.constant 1024 : i32
    %1 = arith.muli %arg1, %c1024_i32 : i32
    %c1_i32 = arith.constant 1 : i32
    %2 = arith.addi %c1_i32, %1 : i32
    %c256_i32_0 = arith.constant 256 : i32
    %3 = arith.addi %0, %c256_i32_0 : i32
    %4 = arith.cmpi slt, %2, %3 : i32
    %c1_i32_1 = arith.constant 1 : i32
    %5 = arith.addi %c1_i32_1, %1 : i32
    %c1024_i32_2 = arith.constant 1024 : i32
    %6 = arith.addi %5, %c1024_i32_2 : i32
    %7 = arith.cmpi slt, %0, %6 : i32
    %8 = arith.andi %4, %7 : i1
    %c1_i32_3 = arith.constant 1 : i32
    %9 = arith.cmpi slt, %0, %c1_i32_3 : i32
    %10 = arith.ori %8, %9 : i1
    %true = arith.constant true
    %11 = arith.xori %10, %true : i1
    %12 = arith.extui %11 : i1 to i32
    %c0_i32 = arith.constant 0 : i32
    %13 = arith.cmpi ne, %12, %c0_i32 : i32
    scf.if %13 {
      %cst = arith.constant 0.000000e+00 : f32
      %16 = vector.broadcast %cst : f32 to vector<256x1024xf32>
      %c0 = arith.constant 0 : index
      %c0_5 = arith.constant 0 : index
      %17 = vector.load %arg4[%c0, %c0_5] : memref<256x1024xf32, #tpu.memory_space<vmem>>, vector<256x1024xf32>
      tpu.vector_store %arg4[%c0, %c0_5], %16 {strides = array<i32>} : memref<256x1024xf32, #tpu.memory_space<vmem>>, vector<256x1024xf32>,
    } else {
    }
    %14 = arith.extui %10 : i1 to i32
    %c0_i32_4 = arith.constant 0 : i32
    %15 = arith.cmpi ne, %14, %c0_i32_4 : i32
    scf.if %15 {
      %16 = tpu.iota {dimensions = array<i32: 0>} : vector<256x1024xi32>
      %17 = vector.broadcast %0 : i32 to vector<256x1024xi32>
      %18 = arith.addi %16, %17 : vector<256x1024xi32>
      %19 = tpu.iota {dimensions = array<i32: 1>} : vector<256x1024xi32>
      %20 = vector.broadcast %1 : i32 to vector<256x1024xi32>
      %21 = arith.addi %19, %20 : vector<256x1024xi32>
      %c0 = arith.constant 0 : index
      %c0_5 = arith.constant 0 : index
      %22 = vector.load %arg3[%c0, %c0_5] : memref<1x1024xf32, #tpu.memory_space<vmem>>, vector<1x1024xf32>
      %23 = vector.shape_cast %22 : vector<1x1024xf32> to vector<1x1024xf32>
      %24 = vector.broadcast %23 : vector<1x1024xf32> to vector<256x1024xf32>
      %c1_i32_6 = arith.constant 1 : i32
      %25 = vector.broadcast %c1_i32_6 : i32 to vector<256x1024xi32>
      %26 = arith.subi %18, %25 : vector<256x1024xi32>
      %27 = arith.cmpi eq, %26, %21 : vector<256x1024xi32>
      %cst = arith.constant 0.000000e+00 : f32
      %28 = vector.broadcast %cst : f32 to vector<256x1024xf32>
      %29 = arith.select %27, %24, %28 : vector<256x1024xi1>, vector<256x1024xf32>
      %c0_7 = arith.constant 0 : index
      %c0_8 = arith.constant 0 : index
      %30 = vector.load %arg2[%c0_7, %c0_8] : memref<1x1024xf32, #tpu.memory_space<vmem>>, vector<1x1024xf32>
      %31 = vector.shape_cast %30 : vector<1x1024xf32> to vector<1x1024xf32>
      %32 = vector.broadcast %31 : vector<1x1024xf32> to vector<256x1024xf32>
      %c1_i32_9 = arith.constant 1 : i32
      %33 = vector.broadcast %c1_i32_9 : i32 to vector<256x1024xi32>
      %34 = arith.cmpi slt, %18, %33 : vector<256x1024xi32>
      %35 = arith.select %34, %32, %29 : vector<256x1024xi1>, vector<256x1024xf32>
      %c0_10 = arith.constant 0 : index
      %c0_11 = arith.constant 0 : index
      %36 = vector.load %arg4[%c0_10, %c0_11] : memref<256x1024xf32, #tpu.memory_space<vmem>>, vector<256x1024xf32>
      tpu.vector_store %arg4[%c0_10, %c0_11], %35 {strides = array<i32>} : memref<256x1024xf32, #tpu.memory_space<vmem>>, vector<256x1024xf32>,
    } else {
    }
    return
  }
  func.func @transform_0(%arg0: i32, %arg1: i32) -> (i32, i32) {
    %c0_i32 = arith.constant 0 : i32
    %c0_i32_0 = arith.constant 0 : i32
    return %c0_i32, %arg1 : i32, i32
  }
  func.func @transform_1(%arg0: i32, %arg1: i32) -> (i32, i32) {
    %c0_i32 = arith.constant 0 : i32
    %c0_i32_0 = arith.constant 0 : i32
    return %c0_i32, %arg1 : i32, i32
  }
  func.func @transform_2(%arg0: i32, %arg1: i32) -> (i32, i32) {
    %c0_i32 = arith.constant 0 : i32
    return %arg0, %arg1 : i32, i32
  }
}

</mosaic_0001>

<llo_original>
// kernel: tpu_custom_call.1
$region0: #{tpu_custom_call.1}
  #allocation0 [shape = 'u32[]', space=smem, size = 0x4, offset = 0x4, fixed_abs, tag = 'smem constant byte address 0x4 - core index']
  #allocation1 [shape = 'u32[144,128]{1,0:T(1,128)}', space=vmem, size = 0x12000, scoped, tag = 'internal scratch']
  %s0 = inlined_call_operand.hbm [shape: f32[1,1024], index: 0, kind: input, shape index: {}]
  %s1 = inlined_call_operand.hbm [shape: f32[1,1024], index: 1, kind: input, shape index: {}]
  %s2 = inlined_call_operand.hbm [shape: f32[1025,1024], index: 2, kind: output, shape index: {}]
  %s3 = sld [smem:[#allocation0]]
  $region57: #{tpu_custom_call.1} parent=0
    _
  %s5 = ssub.s32 1, %s3
  %s6 = scalar_select 0, %s5, %s3
  $region1: #{tpu_custom_call.1} parent=0
    #allocation2 [shape = 'u8[4096]{0}', space=vmem, size = 0x1000, scoped, tag = 'input window, operand 0, single buffered']
    #allocation3 [shape = 's32[2]{0}', space=sflag, size = 0x8, scoped, tag = 'scoped memory for tpu_custom_call.1']
    #allocation4 [shape = 's32[2]{0}', space=sflag, size = 0x8, scoped, tag = 'scoped memory for tpu_custom_call.1']
    #allocation5 [shape = 'u8[4096]{0}', space=vmem, size = 0x1000, scoped, tag = 'input window, operand 1, single buffered']
    #allocation6 [shape = 's32[1]{0}', space=sflag, size = 0x4, scoped, tag = 'scoped memory for tpu_custom_call.1']
    #allocation7 [shape = 'u8[2097152]{0}', space=vmem, size = 0x200000, scoped, tag = 'output window, operand 0']
    %7 = vsyncpa [#allocation3], 0
    %8 = vsyncpa [#allocation6], 0
    %9 = vsyncpa [#allocation4], 0
    %s10 = scalar_lea.sflag [#allocation4], 1
    %11 = vsyncpa %s10, 0
    loop: start=0, step=1, limit=7
    $region2: #{tpu_custom_call.1} parent=1 // loop_pre_header
      _
    $region3: #{tpu_custom_call.1} parent=1 // loop_header
      %s13 = sphi 0, %s17
      %p14 = scmp.ge.s32.totalorder %s13, 7
      %s20 = sphi 0, %s32
      %s21 = sphi 0, %s28
      %s22 = sphi 0, %s20
      %s23 = sphi 0, %s21
      %s24 = sphi 0, %s22
      %s25 = sphi 0, %s23
      %s35 = sphi 0, %s37
      %s38 = sphi 0, %s35
      %s39 = sphi 0, %s38
      %s55 = sphi 0, %s39
      %s61 = sphi 0, %s63
      %s64 = sphi 0, %s61
      %s65 = sphi 0, %s64
      %s81 = sphi 0, %s65
      %s89 = sphi 0, %s91
      %s92 = sphi 0, %s89
      %s93 = sphi 0, %s92
      %s109 = sphi 0, %s93
    $region4: #{tpu_custom_call.1} parent=1 // loop_header_branch
      %16 = sbr.rel (%p14) target = $region8
    $region5: #{tpu_custom_call.1} parent=1 // loop_body
      %s18 = ssub.s32 %s13, 1
      %s19 = ssub.s32 %s13, 2
      %s26 = sadd.s32 1, %s21
      %p27 = scmp.ge.s32.totalorder %s26, 1
      %s28 = scalar_select %p27, 0, %s26
      %s29 = sadd.s32 1, %s20
      %s30 = scalar_select %p27, %s29, %s20
      %p31 = scmp.ge.s32.totalorder %s30, 5
      %s32 = scalar_select %p31, 0, %s30
      %s33 = ssub.s32 %s21, %s28
      %p34 = scmp.eq.s32.totalorder %s33, 0
      %s36 = sadd.s32 %s35, 1
      %s37 = scalar_select %p34, %s35, %s36
      %p40 = pneg %p34
      %p41 = scmp.eq.s32.totalorder %s13, 4
      %p42 = por %p40, %p41
      %p43 = scmp.ne.s32.totalorder %s35, %s38
      %p44 = scmp.eq.s32.totalorder %s13, 0
      %p45 = por %p43, %p44
      %p46 = scmp.ne.s32.totalorder %s35, %s38
      %p47 = scmp.eq.s32.totalorder %s18, 4
      %p48 = por %p46, %p47
      %p49 = scmp.ne.s32.totalorder %s38, %s39
      %p50 = scmp.eq.s32.totalorder %s18, 0
      %p51 = por %p49, %p50
      %p52 = scmp.ne.s32.totalorder %s38, %s39
      %p53 = scmp.eq.s32.totalorder %s19, 4
      %p54 = por %p52, %p53
      %p56 = scmp.ne.s32.totalorder %s39, %s55
      %p57 = scmp.eq.s32.totalorder %s19, 0
      %p58 = por %p56, %p57
      %s59 = ssub.s32 %s21, %s28
      %p60 = scmp.eq.s32.totalorder %s59, 0
      %s62 = sadd.s32 %s61, 1
      %s63 = scalar_select %p60, %s61, %s62
      %p66 = pneg %p60
      %p67 = scmp.eq.s32.totalorder %s13, 4
      %p68 = por %p66, %p67
      %p69 = scmp.ne.s32.totalorder %s61, %s64
      %p70 = scmp.eq.s32.totalorder %s13, 0
      %p71 = por %p69, %p70
      %p72 = scmp.ne.s32.totalorder %s61, %s64
      %p73 = scmp.eq.s32.totalorder %s18, 4
      %p74 = por %p72, %p73
      %p75 = scmp.ne.s32.totalorder %s64, %s65
      %p76 = scmp.eq.s32.totalorder %s18, 0
      %p77 = por %p75, %p76
      %p78 = scmp.ne.s32.totalorder %s64, %s65
      %p79 = scmp.eq.s32.totalorder %s19, 4
      %p80 = por %p78, %p79
      %p82 = scmp.ne.s32.totalorder %s65, %s81
      %p83 = scmp.eq.s32.totalorder %s19, 0
      %p84 = por %p82, %p83
      %s85 = ssub.s32 %s20, %s32
      %s86 = ssub.s32 %s21, %s28
      %s87 = sor.u32 %s85, %s86
      %p88 = scmp.eq.s32.totalorder %s87, 0
      %s90 = sadd.s32 %s89, 1
      %s91 = scalar_select %p88, %s89, %s90
      %p94 = pneg %p88
      %p95 = scmp.eq.s32.totalorder %s13, 4
      %p96 = por %p94, %p95
      %p97 = scmp.ne.s32.totalorder %s89, %s92
      %p98 = scmp.eq.s32.totalorder %s13, 0
      %p99 = por %p97, %p98
      %p100 = scmp.ne.s32.totalorder %s89, %s92
      %p101 = scmp.eq.s32.totalorder %s18, 4
      %p102 = por %p100, %p101
      %p103 = scmp.ne.s32.totalorder %s92, %s93
      %p104 = scmp.eq.s32.totalorder %s18, 0
      %p105 = por %p103, %p104
      %p106 = scmp.ne.s32.totalorder %s92, %s93
      %p107 = scmp.eq.s32.totalorder %s19, 4
      %p108 = por %p106, %p107
      %p110 = scmp.ne.s32.totalorder %s93, %s109
      %p111 = scmp.eq.s32.totalorder %s19, 0
      %p112 = por %p110, %p111
      %p113 = scmp.le.s32.totalorder 1, %s13
      %p114 = scmp.lt.s32.totalorder %s13, 6
      %p115 = pnand %p113, %p114
      %p116 = pneg %p115
      // Predicated region
      $region9: #{tpu_custom_call.1} parent=5 // pred_check
        _
      $region10: #{tpu_custom_call.1} parent=5 // pred_check_branch
        %118 = sbr.rel (%p115) target = $region12
      $region11: #{tpu_custom_call.1} parent=5 // pred_region
        %s119 = ssub.s32 %s13, 1
        // Predicated region
        $region13: #{tpu_custom_call.1} parent=11 // pred_check
          %p120 = pneg %p51
        $region14: #{tpu_custom_call.1} parent=11 // pred_check_branch
          %122 = sbr.rel (%p120) target = $region16
        $region15: #{tpu_custom_call.1} parent=11 // pred_region
          %s123 = smul.u32 8, %s23
          %s125 = ssub.s32 128, 128
          %126 = vsyncadd [#allocation3], %s125
          %s127 = smul.addr %s123, 16
          %s128 = scalar_lea.hbm %s0, %s127
          %s130 = sshll.u32 [#allocation2], 4
          %s131 = int_to_ptr.vmem [resolvable:$true] %s130
          %133 = dma.hbm_to_vmem [thread:$0]  %s128, 128, %s131, [#allocation3]
        $region16: #{tpu_custom_call.1} parent=11 // pred_fallthru
          _
        // Predicated region
        $region17: #{tpu_custom_call.1} parent=11 // pred_check
          %p134 = pneg %p77
        $region18: #{tpu_custom_call.1} parent=11 // pred_check_branch
          %136 = sbr.rel (%p134) target = $region20
        $region19: #{tpu_custom_call.1} parent=11 // pred_region
          %s137 = smul.u32 8, %s23
          %s139 = ssub.s32 128, 128
          %140 = vsyncadd [#allocation6], %s139
          %s141 = smul.addr %s137, 16
          %s142 = scalar_lea.hbm %s1, %s141
          %s144 = sshll.u32 [#allocation5], 4
          %s145 = int_to_ptr.vmem [resolvable:$true] %s144
          %147 = dma.hbm_to_vmem [thread:$0]  %s142, 128, %s145, [#allocation6]
        $region20: #{tpu_custom_call.1} parent=11 // pred_fallthru
          _
      $region12: #{tpu_custom_call.1} parent=5 // pred_fallthru
        _
      %p148 = scmp.lt.s32.totalorder %s13, 5
      // Predicated region
      $region21: #{tpu_custom_call.1} parent=5 // pred_check
        %p149 = pneg %p148
      $region22: #{tpu_custom_call.1} parent=5 // pred_check_branch
        %151 = sbr.rel (%p149) target = $region24
      $region23: #{tpu_custom_call.1} parent=5 // pred_region
        _
      $region24: #{tpu_custom_call.1} parent=5 // pred_fallthru
        _
      %p152 = scmp.le.s32.totalorder 1, %s13
      %p153 = scmp.lt.s32.totalorder %s13, 6
      %p154 = pnand %p152, %p153
      %p155 = pneg %p154
      // Predicated region
      $region25: #{tpu_custom_call.1} parent=5 // pred_check
        _
      $region26: #{tpu_custom_call.1} parent=5 // pred_check_branch
        %157 = sbr.rel (%p154) target = $region28
      $region27: #{tpu_custom_call.1} parent=5 // pred_region
        %s158 = ssub.s32 %s13, 1
        // Predicated region
        $region29: #{tpu_custom_call.1} parent=27 // pred_check
          %p159 = pneg %p51
        $region30: #{tpu_custom_call.1} parent=27 // pred_check_branch
          %161 = sbr.rel (%p159) target = $region32
        $region31: #{tpu_custom_call.1} parent=27 // pred_region
          %162 = dma.done [#allocation3], 128
        $region32: #{tpu_custom_call.1} parent=27 // pred_fallthru
          _
        // Predicated region
        $region33: #{tpu_custom_call.1} parent=27 // pred_check
          %p163 = pneg %p77
        $region34: #{tpu_custom_call.1} parent=27 // pred_check_branch
          %165 = sbr.rel (%p163) target = $region36
        $region35: #{tpu_custom_call.1} parent=27 // pred_region
          %166 = dma.done [#allocation6], 128
        $region36: #{tpu_custom_call.1} parent=27 // pred_fallthru
          _
        %p167 = pneg %p51
        %p168 = pneg %p48
        %p169 = pneg %p77
        %p170 = pneg %p74
        %p171 = pneg %p105
        %p172 = pneg %p102
        %s173 = sand.u32 %s92, 1
        %s174 = scalar_lea.sflag [#allocation4], %s173
        %s175 = sand.u32 %s92, 1
        %s176 = smul.addr %s175, 2048
        %s177 = scalar_lea.vmem [#allocation7], %s176
        %s178 = smul.u32 8, %s23
        %s179 = smul.u32 8, %s23
        %s180 = smul.u32 32, %s22
        %s181 = smul.u32 8, %s23
        %s182 = ssub.s32 129, %s180
        %p183 = scmp.lt.s32.totalorder %s182, 32
        %s184 = scalar_select %p183, %s182, 32
        %s185 = smul.u32 128, %s184
        %s186 = smul.u32 %s185, 8
        %s187 = smul.u32 %s22, 256
        %s188 = smul.u32 %s23, 1024
        %s189 = sadd.s32 %s188, 1
        %s190 = sadd.s32 %s187, 256
        %p191 = scmp.lt.s32.totalorder %s189, %s190
        %s192 = sadd.s32 %s188, 1025
        %p193 = scmp.lt.s32.totalorder %s187, %s192
        %p194 = pnand %p191, %p193
        %p195 = pneg %p194
        %p196 = scmp.lt.s32.totalorder %s187, 1
        %p197 = por %p195, %p196
        // Predicated region
        $region37: #{tpu_custom_call.1} parent=27 // pred_check
          %p198 = pneg %p197
        $region38: #{tpu_custom_call.1} parent=27 // pred_check_branch
          %200 = sbr.rel (%p198) target = $region40
        $region39: #{tpu_custom_call.1} parent=27 // pred_region
          %v201 = vlaneseq
          %v202 = vshrl.u32 %v201, 7
          %v203 = vadd.s32 %v202, 8
          %v204 = vadd.s32 %v202, 16
          %v205 = vadd.s32 %v202, 24
          %v206 = vadd.s32 %v202, 32
          %v207 = vadd.s32 %v202, 40
          %v208 = vadd.s32 %v202, 48
          %v209 = vadd.s32 %v202, 56
          %v210 = vadd.s32 %v202, 64
          %v211 = vadd.s32 %v202, 72
          %v212 = vadd.s32 %v202, 80
          %v213 = vadd.s32 %v202, 88
          %v214 = vadd.s32 %v202, 96
          %v215 = vadd.s32 %v202, 104
          %v216 = vadd.s32 %v202, 112
          %v217 = vadd.s32 %v202, 120
          %v218 = vadd.s32 %v202, 128
          %v219 = vadd.s32 %v202, 136
          %v220 = vadd.s32 %v202, 144
          %v221 = vadd.s32 %v202, 152
          %v222 = vadd.s32 %v202, 160
          %v223 = vadd.s32 %v202, 168
          %v224 = vadd.s32 %v202, 176
          %v225 = vadd.s32 %v202, 184
          %v226 = vadd.s32 %v202, 192
          %v227 = vadd.s32 %v202, 200
          %v228 = vadd.s32 %v202, 208
          %v229 = vadd.s32 %v202, 216
          %v230 = vadd.s32 %v202, 224
          %v231 = vadd.s32 %v202, 232
          %v232 = vadd.s32 %v202, 240
          %v233 = vadd.s32 %v202, 248
          %v234 = vstv %s187
          %v235 = vadd.s32 %v202, %v234
          %v236 = vadd.s32 %v203, %v234
          %v237 = vadd.s32 %v204, %v234
          %v238 = vadd.s32 %v205, %v234
          %v239 = vadd.s32 %v206, %v234
          %v240 = vadd.s32 %v207, %v234
          %v241 = vadd.s32 %v208, %v234
          %v242 = vadd.s32 %v209, %v234
          %v243 = vadd.s32 %v210, %v234
          %v244 = vadd.s32 %v211, %v234
          %v245 = vadd.s32 %v212, %v234
          %v246 = vadd.s32 %v213, %v234
          %v247 = vadd.s32 %v214, %v234
          %v248 = vadd.s32 %v215, %v234
          %v249 = vadd.s32 %v216, %v234
          %v250 = vadd.s32 %v217, %v234
          %v251 = vadd.s32 %v218, %v234
          %v252 = vadd.s32 %v219, %v234
          %v253 = vadd.s32 %v220, %v234
          %v254 = vadd.s32 %v221, %v234
          %v255 = vadd.s32 %v222, %v234
          %v256 = vadd.s32 %v223, %v234
          %v257 = vadd.s32 %v224, %v234
          %v258 = vadd.s32 %v225, %v234
          %v259 = vadd.s32 %v226, %v234
          %v260 = vadd.s32 %v227, %v234
          %v261 = vadd.s32 %v228, %v234
          %v262 = vadd.s32 %v229, %v234
          %v263 = vadd.s32 %v230, %v234
          %v264 = vadd.s32 %v231, %v234
          %v265 = vadd.s32 %v232, %v234
          %v266 = vadd.s32 %v233, %v234
          %v267 = vlaneseq
          %v268 = vand.u32 %v267, 127
          %v269 = vadd.s32 %v268, 128
          %v270 = vadd.s32 %v268, 256
          %v271 = vadd.s32 %v268, 384
          %v272 = vadd.s32 %v268, 512
          %v273 = vadd.s32 %v268, 640
          %v274 = vadd.s32 %v268, 768
          %v275 = vadd.s32 %v268, 896
          %v276 = vstv %s188
          %v277 = vadd.s32 %v268, %v276
          %v278 = vadd.s32 %v269, %v276
          %v279 = vadd.s32 %v270, %v276
          %v280 = vadd.s32 %v271, %v276
          %v281 = vadd.s32 %v272, %v276
          %v282 = vadd.s32 %v273, %v276
          %v283 = vadd.s32 %v274, %v276
          %v284 = vadd.s32 %v275, %v276
          %v285 = vld [vmem:[#allocation5] sm:$0xff]
          %v287 = vlaneseq
          %v288 = vshrl.u32 %v287, 7
          %v289 = vsub.s32 0, %v288
          %v290 = vrot.slane %v285, %v289
          %v291 = vlaneseq
          %v292 = vshrl.u32 %v291, 7
          %v293 = vsub.s32 1, %v292
          %v294 = vrot.slane %v285, %v293
          %v295 = vlaneseq
          %v296 = vshrl.u32 %v295, 7
          %v297 = vsub.s32 2, %v296
          %v298 = vrot.slane %v285, %v297
          %v299 = vlaneseq
          %v300 = vshrl.u32 %v299, 7
          %v301 = vsub.s32 3, %v300
          %v302 = vrot.slane %v285, %v301
          %v303 = vlaneseq
          %v304 = vshrl.u32 %v303, 7
          %v305 = vsub.s32 4, %v304
          %v306 = vrot.slane %v285, %v305
          %v307 = vlaneseq
          %v308 = vshrl.u32 %v307, 7
          %v309 = vsub.s32 5, %v308
          %v310 = vrot.slane %v285, %v309
          %v311 = vlaneseq
          %v312 = vshrl.u32 %v311, 7
          %v313 = vsub.s32 6, %v312
          %v314 = vrot.slane %v285, %v313
          %v315 = vlaneseq
          %v316 = vshrl.u32 %v315, 7
          %v317 = vsub.s32 7, %v316
          %v318 = vrot.slane %v285, %v317
          %v327 = vsub.s32 %v235, 1
          %v328 = vsub.s32 %v236, 1
          %v329 = vsub.s32 %v237, 1
          %v330 = vsub.s32 %v238, 1
          %v331 = vsub.s32 %v239, 1
          %v332 = vsub.s32 %v240, 1
          %v333 = vsub.s32 %v241, 1
          %v334 = vsub.s32 %v242, 1
          %v335 = vsub.s32 %v243, 1
          %v336 = vsub.s32 %v244, 1
          %v337 = vsub.s32 %v245, 1
          %v338 = vsub.s32 %v246, 1
          %v339 = vsub.s32 %v247, 1
          %v340 = vsub.s32 %v248, 1
          %v341 = vsub.s32 %v249, 1
          %v342 = vsub.s32 %v250, 1
          %v343 = vsub.s32 %v251, 1
          %v344 = vsub.s32 %v252, 1
          %v345 = vsub.s32 %v253, 1
          %v346 = vsub.s32 %v254, 1
          %v347 = vsub.s32 %v255, 1
          %v348 = vsub.s32 %v256, 1
          %v349 = vsub.s32 %v257, 1
          %v350 = vsub.s32 %v258, 1
          %v351 = vsub.s32 %v259, 1
          %v352 = vsub.s32 %v260, 1
          %v353 = vsub.s32 %v261, 1
          %v354 = vsub.s32 %v262, 1
          %v355 = vsub.s32 %v263, 1
          %v356 = vsub.s32 %v264, 1
          %v357 = vsub.s32 %v265, 1
          %v358 = vsub.s32 %v266, 1
          %vm359 = vcmp.eq.s32.totalorder %v327, %v277
          %vm360 = vcmp.eq.s32.totalorder %v327, %v278
          %vm361 = vcmp.eq.s32.totalorder %v327, %v279
          %vm362 = vcmp.eq.s32.totalorder %v327, %v280
          %vm363 = vcmp.eq.s32.totalorder %v327, %v281
          %vm364 = vcmp.eq.s32.totalorder %v327, %v282
          %vm365 = vcmp.eq.s32.totalorder %v327, %v283
          %vm366 = vcmp.eq.s32.totalorder %v327, %v284
          %vm367 = vcmp.eq.s32.totalorder %v328, %v277
          %vm368 = vcmp.eq.s32.totalorder %v328, %v278
          %vm369 = vcmp.eq.s32.totalorder %v328, %v279
          %vm370 = vcmp.eq.s32.totalorder %v328, %v280
          %vm371 = vcmp.eq.s32.totalorder %v328, %v281
          %vm372 = vcmp.eq.s32.totalorder %v328, %v282
          %vm373 = vcmp.eq.s32.totalorder %v328, %v283
          %vm374 = vcmp.eq.s32.totalorder %v328, %v284
          %vm375 = vcmp.eq.s32.totalorder %v329, %v277
          %vm376 = vcmp.eq.s32.totalorder %v329, %v278
          %vm377 = vcmp.eq.s32.totalorder %v329, %v279
          %vm378 = vcmp.eq.s32.totalorder %v329, %v280
          %vm379 = vcmp.eq.s32.totalorder %v329, %v281
          %vm380 = vcmp.eq.s32.totalorder %v329, %v282
          %vm381 = vcmp.eq.s32.totalorder %v329, %v283
          %vm382 = vcmp.eq.s32.totalorder %v329, %v284
          %vm383 = vcmp.eq.s32.totalorder %v330, %v277
          %vm384 = vcmp.eq.s32.totalorder %v330, %v278
          %vm385 = vcmp.eq.s32.totalorder %v330, %v279
          %vm386 = vcmp.eq.s32.totalorder %v330, %v280
          %vm387 = vcmp.eq.s32.totalorder %v330, %v281
          %vm388 = vcmp.eq.s32.totalorder %v330, %v282
          %vm389 = vcmp.eq.s32.totalorder %v330, %v283
          %vm390 = vcmp.eq.s32.totalorder %v330, %v284
          %vm391 = vcmp.eq.s32.totalorder %v331, %v277
          %vm392 = vcmp.eq.s32.totalorder %v331, %v278
          %vm393 = vcmp.eq.s32.totalorder %v331, %v279
          %vm394 = vcmp.eq.s32.totalorder %v331, %v280
          %vm395 = vcmp.eq.s32.totalorder %v331, %v281
          %vm396 = vcmp.eq.s32.totalorder %v331, %v282
          %vm397 = vcmp.eq.s32.totalorder %v331, %v283
          %vm398 = vcmp.eq.s32.totalorder %v331, %v284
          %vm399 = vcmp.eq.s32.totalorder %v332, %v277
          %vm400 = vcmp.eq.s32.totalorder %v332, %v278
          %vm401 = vcmp.eq.s32.totalorder %v332, %v279
          %vm402 = vcmp.eq.s32.totalorder %v332, %v280
          %vm403 = vcmp.eq.s32.totalorder %v332, %v281
          %vm404 = vcmp.eq.s32.totalorder %v332, %v282
          %vm405 = vcmp.eq.s32.totalorder %v332, %v283
          %vm406 = vcmp.eq.s32.totalorder %v332, %v284
          %vm407 = vcmp.eq.s32.totalorder %v333, %v277
          %vm408 = vcmp.eq.s32.totalorder %v333, %v278
          %vm409 = vcmp.eq.s32.totalorder %v333, %v279
          %vm410 = vcmp.eq.s32.totalorder %v333, %v280
          %vm411 = vcmp.eq.s32.totalorder %v333, %v281
          %vm412 = vcmp.eq.s32.totalorder %v333, %v282
          %vm413 = vcmp.eq.s32.totalorder %v333, %v283
          %vm414 = vcmp.eq.s32.totalorder %v333, %v284
          %vm415 = vcmp.eq.s32.totalorder %v334, %v277
          %vm416 = vcmp.eq.s32.totalorder %v334, %v278
          %vm417 = vcmp.eq.s32.totalorder %v334, %v279
          %vm418 = vcmp.eq.s32.totalorder %v334, %v280
          %vm419 = vcmp.eq.s32.totalorder %v334, %v281
          %vm420 = vcmp.eq.s32.totalorder %v334, %v282
          %vm421 = vcmp.eq.s32.totalorder %v334, %v283
          %vm422 = vcmp.eq.s32.totalorder %v334, %v284
          %vm423 = vcmp.eq.s32.totalorder %v335, %v277
          %vm424 = vcmp.eq.s32.totalorder %v335, %v278
          %vm425 = vcmp.eq.s32.totalorder %v335, %v279
          %vm426 = vcmp.eq.s32.totalorder %v335, %v280
          %vm427 = vcmp.eq.s32.totalorder %v335, %v281
          %vm428 = vcmp.eq.s32.totalorder %v335, %v282
          %vm429 = vcmp.eq.s32.totalorder %v335, %v283
          %vm430 = vcmp.eq.s32.totalorder %v335, %v284
          %vm431 = vcmp.eq.s32.totalorder %v336, %v277
          %vm432 = vcmp.eq.s32.totalorder %v336, %v278
          %vm433 = vcmp.eq.s32.totalorder %v336, %v279
          %vm434 = vcmp.eq.s32.totalorder %v336, %v280
          %vm435 = vcmp.eq.s32.totalorder %v336, %v281
          %vm436 = vcmp.eq.s32.totalorder %v336, %v282
          %vm437 = vcmp.eq.s32.totalorder %v336, %v283
          %vm438 = vcmp.eq.s32.totalorder %v336, %v284
          %vm439 = vcmp.eq.s32.totalorder %v337, %v277
          %vm440 = vcmp.eq.s32.totalorder %v337, %v278
          %vm441 = vcmp.eq.s32.totalorder %v337, %v279
          %vm442 = vcmp.eq.s32.totalorder %v337, %v280
          %vm443 = vcmp.eq.s32.totalorder %v337, %v281
          %vm444 = vcmp.eq.s32.totalorder %v337, %v282
          %vm445 = vcmp.eq.s32.totalorder %v337, %v283
          %vm446 = vcmp.eq.s32.totalorder %v337, %v284
          %vm447 = vcmp.eq.s32.totalorder %v338, %v277
          %vm448 = vcmp.eq.s32.totalorder %v338, %v278
          %vm449 = vcmp.eq.s32.totalorder %v338, %v279
          %vm450 = vcmp.eq.s32.totalorder %v338, %v280
          %vm451 = vcmp.eq.s32.totalorder %v338, %v281
          %vm452 = vcmp.eq.s32.totalorder %v338, %v282
          %vm453 = vcmp.eq.s32.totalorder %v338, %v283
          %vm454 = vcmp.eq.s32.totalorder %v338, %v284
          %vm455 = vcmp.eq.s32.totalorder %v339, %v277
          %vm456 = vcmp.eq.s32.totalorder %v339, %v278
          %vm457 = vcmp.eq.s32.totalorder %v339, %v279
          %vm458 = vcmp.eq.s32.totalorder %v339, %v280
          %vm459 = vcmp.eq.s32.totalorder %v339, %v281
          %vm460 = vcmp.eq.s32.totalorder %v339, %v282
          %vm461 = vcmp.eq.s32.totalorder %v339, %v283
          %vm462 = vcmp.eq.s32.totalorder %v339, %v284
          %vm463 = vcmp.eq.s32.totalorder %v340, %v277
          %vm464 = vcmp.eq.s32.totalorder %v340, %v278
          %vm465 = vcmp.eq.s32.totalorder %v340, %v279
          %vm466 = vcmp.eq.s32.totalorder %v340, %v280
          %vm467 = vcmp.eq.s32.totalorder %v340, %v281
          %vm468 = vcmp.eq.s32.totalorder %v340, %v282
          %vm469 = vcmp.eq.s32.totalorder %v340, %v283
          %vm470 = vcmp.eq.s32.totalorder %v340, %v284
          %vm471 = vcmp.eq.s32.totalorder %v341, %v277
          %vm472 = vcmp.eq.s32.totalorder %v341, %v278
          %vm473 = vcmp.eq.s32.totalorder %v341, %v279
          %vm474 = vcmp.eq.s32.totalorder %v341, %v280
          %vm475 = vcmp.eq.s32.totalorder %v341, %v281
          %vm476 = vcmp.eq.s32.totalorder %v341, %v282
          %vm477 = vcmp.eq.s32.totalorder %v341, %v283
          %vm478 = vcmp.eq.s32.totalorder %v341, %v284
          %vm479 = vcmp.eq.s32.totalorder %v342, %v277
          %vm480 = vcmp.eq.s32.totalorder %v342, %v278
          %vm481 = vcmp.eq.s32.totalorder %v342, %v279
          %vm482 = vcmp.eq.s32.totalorder %v342, %v280
          %vm483 = vcmp.eq.s32.totalorder %v342, %v281
          %vm484 = vcmp.eq.s32.totalorder %v342, %v282
          %vm485 = vcmp.eq.s32.totalorder %v342, %v283
          %vm486 = vcmp.eq.s32.totalorder %v342, %v284
          %vm487 = vcmp.eq.s32.totalorder %v343, %v277
          %vm488 = vcmp.eq.s32.totalorder %v343, %v278
          %vm489 = vcmp.eq.s32.totalorder %v343, %v279
          %vm490 = vcmp.eq.s32.totalorder %v343, %v280
          %vm491 = vcmp.eq.s32.totalorder %v343, %v281
          %vm492 = vcmp.eq.s32.totalorder %v343, %v282
          %vm493 = vcmp.eq.s32.totalorder %v343, %v283
          %vm494 = vcmp.eq.s32.totalorder %v343, %v284
          %vm495 = vcmp.eq.s32.totalorder %v344, %v277
          %vm496 = vcmp.eq.s32.totalorder %v344, %v278
          %vm497 = vcmp.eq.s32.totalorder %v344, %v279
          %vm498 = vcmp.eq.s32.totalorder %v344, %v280
          %vm499 = vcmp.eq.s32.totalorder %v344, %v281
          %vm500 = vcmp.eq.s32.totalorder %v344, %v282
          %vm501 = vcmp.eq.s32.totalorder %v344, %v283
          %vm502 = vcmp.eq.s32.totalorder %v344, %v284
          %vm503 = vcmp.eq.s32.totalorder %v345, %v277
          %vm504 = vcmp.eq.s32.totalorder %v345, %v278
          %vm505 = vcmp.eq.s32.totalorder %v345, %v279
          %vm506 = vcmp.eq.s32.totalorder %v345, %v280
          %vm507 = vcmp.eq.s32.totalorder %v345, %v281
          %vm508 = vcmp.eq.s32.totalorder %v345, %v282
          %vm509 = vcmp.eq.s32.totalorder %v345, %v283
          %vm510 = vcmp.eq.s32.totalorder %v345, %v284
          %vm511 = vcmp.eq.s32.totalorder %v346, %v277
          %vm512 = vcmp.eq.s32.totalorder %v346, %v278
          %vm513 = vcmp.eq.s32.totalorder %v346, %v279
          %vm514 = vcmp.eq.s32.totalorder %v346, %v280
          %vm515 = vcmp.eq.s32.totalorder %v346, %v281
          %vm516 = vcmp.eq.s32.totalorder %v346, %v282
          %vm517 = vcmp.eq.s32.totalorder %v346, %v283
          %vm518 = vcmp.eq.s32.totalorder %v346, %v284
          %vm519 = vcmp.eq.s32.totalorder %v347, %v277
          %vm520 = vcmp.eq.s32.totalorder %v347, %v278
          %vm521 = vcmp.eq.s32.totalorder %v347, %v279
          %vm522 = vcmp.eq.s32.totalorder %v347, %v280
          %vm523 = vcmp.eq.s32.totalorder %v347, %v281
          %vm524 = vcmp.eq.s32.totalorder %v347, %v282
          %vm525 = vcmp.eq.s32.totalorder %v347, %v283
          %vm526 = vcmp.eq.s32.totalorder %v347, %v284
          %vm527 = vcmp.eq.s32.totalorder %v348, %v277
          %vm528 = vcmp.eq.s32.totalorder %v348, %v278
          %vm529 = vcmp.eq.s32.totalorder %v348, %v279
          %vm530 = vcmp.eq.s32.totalorder %v348, %v280
          %vm531 = vcmp.eq.s32.totalorder %v348, %v281
          %vm532 = vcmp.eq.s32.totalorder %v348, %v282
          %vm533 = vcmp.eq.s32.totalorder %v348, %v283
          %vm534 = vcmp.eq.s32.totalorder %v348, %v284
          %vm535 = vcmp.eq.s32.totalorder %v349, %v277
          %vm536 = vcmp.eq.s32.totalorder %v349, %v278
          %vm537 = vcmp.eq.s32.totalorder %v349, %v279
          %vm538 = vcmp.eq.s32.totalorder %v349, %v280
          %vm539 = vcmp.eq.s32.totalorder %v349, %v281
          %vm540 = vcmp.eq.s32.totalorder %v349, %v282
          %vm541 = vcmp.eq.s32.totalorder %v349, %v283
          %vm542 = vcmp.eq.s32.totalorder %v349, %v284
          %vm543 = vcmp.eq.s32.totalorder %v350, %v277
          %vm544 = vcmp.eq.s32.totalorder %v350, %v278
          %vm545 = vcmp.eq.s32.totalorder %v350, %v279
          %vm546 = vcmp.eq.s32.totalorder %v350, %v280
          %vm547 = vcmp.eq.s32.totalorder %v350, %v281
          %vm548 = vcmp.eq.s32.totalorder %v350, %v282
          %vm549 = vcmp.eq.s32.totalorder %v350, %v283
          %vm550 = vcmp.eq.s32.totalorder %v350, %v284
          %vm551 = vcmp.eq.s32.totalorder %v351, %v277
          %vm552 = vcmp.eq.s32.totalorder %v351, %v278
          %vm553 = vcmp.eq.s32.totalorder %v351, %v279
          %vm554 = vcmp.eq.s32.totalorder %v351, %v280
          %vm555 = vcmp.eq.s32.totalorder %v351, %v281
          %vm556 = vcmp.eq.s32.totalorder %v351, %v282
          %vm557 = vcmp.eq.s32.totalorder %v351, %v283
          %vm558 = vcmp.eq.s32.totalorder %v351, %v284
          %vm559 = vcmp.eq.s32.totalorder %v352, %v277
          %vm560 = vcmp.eq.s32.totalorder %v352, %v278
          %vm561 = vcmp.eq.s32.totalorder %v352, %v279
          %vm562 = vcmp.eq.s32.totalorder %v352, %v280
          %vm563 = vcmp.eq.s32.totalorder %v352, %v281
          %vm564 = vcmp.eq.s32.totalorder %v352, %v282
          %vm565 = vcmp.eq.s32.totalorder %v352, %v283
          %vm566 = vcmp.eq.s32.totalorder %v352, %v284
          %vm567 = vcmp.eq.s32.totalorder %v353, %v277
          %vm568 = vcmp.eq.s32.totalorder %v353, %v278
          %vm569 = vcmp.eq.s32.totalorder %v353, %v279
          %vm570 = vcmp.eq.s32.totalorder %v353, %v280
          %vm571 = vcmp.eq.s32.totalorder %v353, %v281
          %vm572 = vcmp.eq.s32.totalorder %v353, %v282
          %vm573 = vcmp.eq.s32.totalorder %v353, %v283
          %vm574 = vcmp.eq.s32.totalorder %v353, %v284
          %vm575 = vcmp.eq.s32.totalorder %v354, %v277
          %vm576 = vcmp.eq.s32.totalorder %v354, %v278
          %vm577 = vcmp.eq.s32.totalorder %v354, %v279
          %vm578 = vcmp.eq.s32.totalorder %v354, %v280
          %vm579 = vcmp.eq.s32.totalorder %v354, %v281
          %vm580 = vcmp.eq.s32.totalorder %v354, %v282
          %vm581 = vcmp.eq.s32.totalorder %v354, %v283
          %vm582 = vcmp.eq.s32.totalorder %v354, %v284
          %vm583 = vcmp.eq.s32.totalorder %v355, %v277
          %vm584 = vcmp.eq.s32.totalorder %v355, %v278
          %vm585 = vcmp.eq.s32.totalorder %v355, %v279
          %vm586 = vcmp.eq.s32.totalorder %v355, %v280
          %vm587 = vcmp.eq.s32.totalorder %v355, %v281
          %vm588 = vcmp.eq.s32.totalorder %v355, %v282
          %vm589 = vcmp.eq.s32.totalorder %v355, %v283
          %vm590 = vcmp.eq.s32.totalorder %v355, %v284
          %vm591 = vcmp.eq.s32.totalorder %v356, %v277
          %vm592 = vcmp.eq.s32.totalorder %v356, %v278
          %vm593 = vcmp.eq.s32.totalorder %v356, %v279
          %vm594 = vcmp.eq.s32.totalorder %v356, %v280
          %vm595 = vcmp.eq.s32.totalorder %v356, %v281
          %vm596 = vcmp.eq.s32.totalorder %v356, %v282
          %vm597 = vcmp.eq.s32.totalorder %v356, %v283
          %vm598 = vcmp.eq.s32.totalorder %v356, %v284
          %vm599 = vcmp.eq.s32.totalorder %v357, %v277
          %vm600 = vcmp.eq.s32.totalorder %v357, %v278
          %vm601 = vcmp.eq.s32.totalorder %v357, %v279
          %vm602 = vcmp.eq.s32.totalorder %v357, %v280
          %vm603 = vcmp.eq.s32.totalorder %v357, %v281
          %vm604 = vcmp.eq.s32.totalorder %v357, %v282
          %vm605 = vcmp.eq.s32.totalorder %v357, %v283
          %vm606 = vcmp.eq.s32.totalorder %v357, %v284
          %vm607 = vcmp.eq.s32.totalorder %v358, %v277
          %vm608 = vcmp.eq.s32.totalorder %v358, %v278
          %vm609 = vcmp.eq.s32.totalorder %v358, %v279
          %vm610 = vcmp.eq.s32.totalorder %v358, %v280
          %vm611 = vcmp.eq.s32.totalorder %v358, %v281
          %vm612 = vcmp.eq.s32.totalorder %v358, %v282
          %vm613 = vcmp.eq.s32.totalorder %v358, %v283
          %vm614 = vcmp.eq.s32.totalorder %v358, %v284
          %v615 = vsel %vm359, %v290, 0.0
          %v616 = vsel %vm360, %v294, 0.0
          %v617 = vsel %vm361, %v298, 0.0
          %v618 = vsel %vm362, %v302, 0.0
          %v619 = vsel %vm363, %v306, 0.0
          %v620 = vsel %vm364, %v310, 0.0
          %v621 = vsel %vm365, %v314, 0.0
          %v622 = vsel %vm366, %v318, 0.0
          %v623 = vsel %vm367, %v290, 0.0
          %v624 = vsel %vm368, %v294, 0.0
          %v625 = vsel %vm369, %v298, 0.0
          %v626 = vsel %vm370, %v302, 0.0
          %v627 = vsel %vm371, %v306, 0.0
          %v628 = vsel %vm372, %v310, 0.0
          %v629 = vsel %vm373, %v314, 0.0
          %v630 = vsel %vm374, %v318, 0.0
          %v631 = vsel %vm375, %v290, 0.0
          %v632 = vsel %vm376, %v294, 0.0
          %v633 = vsel %vm377, %v298, 0.0
          %v634 = vsel %vm378, %v302, 0.0
          %v635 = vsel %vm379, %v306, 0.0
          %v636 = vsel %vm380, %v310, 0.0
          %v637 = vsel %vm381, %v314, 0.0
          %v638 = vsel %vm382, %v318, 0.0
          %v639 = vsel %vm383, %v290, 0.0
          %v640 = vsel %vm384, %v294, 0.0
          %v641 = vsel %vm385, %v298, 0.0
          %v642 = vsel %vm386, %v302, 0.0
          %v643 = vsel %vm387, %v306, 0.0
          %v644 = vsel %vm388, %v310, 0.0
          %v645 = vsel %vm389, %v314, 0.0
          %v646 = vsel %vm390, %v318, 0.0
          %v647 = vsel %vm391, %v290, 0.0
          %v648 = vsel %vm392, %v294, 0.0
          %v649 = vsel %vm393, %v298, 0.0
          %v650 = vsel %vm394, %v302, 0.0
          %v651 = vsel %vm395, %v306, 0.0
          %v652 = vsel %vm396, %v310, 0.0
          %v653 = vsel %vm397, %v314, 0.0
          %v654 = vsel %vm398, %v318, 0.0
          %v655 = vsel %vm399, %v290, 0.0
          %v656 = vsel %vm400, %v294, 0.0
          %v657 = vsel %vm401, %v298, 0.0
          %v658 = vsel %vm402, %v302, 0.0
          %v659 = vsel %vm403, %v306, 0.0
          %v660 = vsel %vm404, %v310, 0.0
          %v661 = vsel %vm405, %v314, 0.0
          %v662 = vsel %vm406, %v318, 0.0
          %v663 = vsel %vm407, %v290, 0.0
          %v664 = vsel %vm408, %v294, 0.0
          %v665 = vsel %vm409, %v298, 0.0
          %v666 = vsel %vm410, %v302, 0.0
          %v667 = vsel %vm411, %v306, 0.0
          %v668 = vsel %vm412, %v310, 0.0
          %v669 = vsel %vm413, %v314, 0.0
          %v670 = vsel %vm414, %v318, 0.0
          %v671 = vsel %vm415, %v290, 0.0
          %v672 = vsel %vm416, %v294, 0.0
          %v673 = vsel %vm417, %v298, 0.0
          %v674 = vsel %vm418, %v302, 0.0
          %v675 = vsel %vm419, %v306, 0.0
          %v676 = vsel %vm420, %v310, 0.0
          %v677 = vsel %vm421, %v314, 0.0
          %v678 = vsel %vm422, %v318, 0.0
          %v679 = vsel %vm423, %v290, 0.0
          %v680 = vsel %vm424, %v294, 0.0
          %v681 = vsel %vm425, %v298, 0.0
          %v682 = vsel %vm426, %v302, 0.0
          %v683 = vsel %vm427, %v306, 0.0
          %v684 = vsel %vm428, %v310, 0.0
          %v685 = vsel %vm429, %v314, 0.0
          %v686 = vsel %vm430, %v318, 0.0
          %v687 = vsel %vm431, %v290, 0.0
          %v688 = vsel %vm432, %v294, 0.0
          %v689 = vsel %vm433, %v298, 0.0
          %v690 = vsel %vm434, %v302, 0.0
          %v691 = vsel %vm435, %v306, 0.0
          %v692 = vsel %vm436, %v310, 0.0
          %v693 = vsel %vm437, %v314, 0.0
          %v694 = vsel %vm438, %v318, 0.0
          %v695 = vsel %vm439, %v290, 0.0
          %v696 = vsel %vm440, %v294, 0.0
          %v697 = vsel %vm441, %v298, 0.0
          %v698 = vsel %vm442, %v302, 0.0
          %v699 = vsel %vm443, %v306, 0.0
          %v700 = vsel %vm444, %v310, 0.0
          %v701 = vsel %vm445, %v314, 0.0
          %v702 = vsel %vm446, %v318, 0.0
          %v703 = vsel %vm447, %v290, 0.0
          %v704 = vsel %vm448, %v294, 0.0
          %v705 = vsel %vm449, %v298, 0.0
          %v706 = vsel %vm450, %v302, 0.0
          %v707 = vsel %vm451, %v306, 0.0
          %v708 = vsel %vm452, %v310, 0.0
          %v709 = vsel %vm453, %v314, 0.0
          %v710 = vsel %vm454, %v318, 0.0
          %v711 = vsel %vm455, %v290, 0.0
          %v712 = vsel %vm456, %v294, 0.0
          %v713 = vsel %vm457, %v298, 0.0
          %v714 = vsel %vm458, %v302, 0.0
          %v715 = vsel %vm459, %v306, 0.0
          %v716 = vsel %vm460, %v310, 0.0
          %v717 = vsel %vm461, %v314, 0.0
          %v718 = vsel %vm462, %v318, 0.0
          %v719 = vsel %vm463, %v290, 0.0
          %v720 = vsel %vm464, %v294, 0.0
          %v721 = vsel %vm465, %v298, 0.0
          %v722 = vsel %vm466, %v302, 0.0
          %v723 = vsel %vm467, %v306, 0.0
          %v724 = vsel %vm468, %v310, 0.0
          %v725 = vsel %vm469, %v314, 0.0
          %v726 = vsel %vm470, %v318, 0.0
          %v727 = vsel %vm471, %v290, 0.0
          %v728 = vsel %vm472, %v294, 0.0
          %v729 = vsel %vm473, %v298, 0.0
          %v730 = vsel %vm474, %v302, 0.0
          %v731 = vsel %vm475, %v306, 0.0
          %v732 = vsel %vm476, %v310, 0.0
          %v733 = vsel %vm477, %v314, 0.0
          %v734 = vsel %vm478, %v318, 0.0
          %v735 = vsel %vm479, %v290, 0.0
          %v736 = vsel %vm480, %v294, 0.0
          %v737 = vsel %vm481, %v298, 0.0
          %v738 = vsel %vm482, %v302, 0.0
          %v739 = vsel %vm483, %v306, 0.0
          %v740 = vsel %vm484, %v310, 0.0
          %v741 = vsel %vm485, %v314, 0.0
          %v742 = vsel %vm486, %v318, 0.0
          %v743 = vsel %vm487, %v290, 0.0
          %v744 = vsel %vm488, %v294, 0.0
          %v745 = vsel %vm489, %v298, 0.0
          %v746 = vsel %vm490, %v302, 0.0
          %v747 = vsel %vm491, %v306, 0.0
          %v748 = vsel %vm492, %v310, 0.0
          %v749 = vsel %vm493, %v314, 0.0
          %v750 = vsel %vm494, %v318, 0.0
          %v751 = vsel %vm495, %v290, 0.0
          %v752 = vsel %vm496, %v294, 0.0
          %v753 = vsel %vm497, %v298, 0.0
          %v754 = vsel %vm498, %v302, 0.0
          %v755 = vsel %vm499, %v306, 0.0
          %v756 = vsel %vm500, %v310, 0.0
          %v757 = vsel %vm501, %v314, 0.0
          %v758 = vsel %vm502, %v318, 0.0
          %v759 = vsel %vm503, %v290, 0.0
          %v760 = vsel %vm504, %v294, 0.0
          %v761 = vsel %vm505, %v298, 0.0
          %v762 = vsel %vm506, %v302, 0.0
          %v763 = vsel %vm507, %v306, 0.0
          %v764 = vsel %vm508, %v310, 0.0
          %v765 = vsel %vm509, %v314, 0.0
          %v766 = vsel %vm510, %v318, 0.0
          %v767 = vsel %vm511, %v290, 0.0
          %v768 = vsel %vm512, %v294, 0.0
          %v769 = vsel %vm513, %v298, 0.0
          %v770 = vsel %vm514, %v302, 0.0
          %v771 = vsel %vm515, %v306, 0.0
          %v772 = vsel %vm516, %v310, 0.0
          %v773 = vsel %vm517, %v314, 0.0
          %v774 = vsel %vm518, %v318, 0.0
          %v775 = vsel %vm519, %v290, 0.0
          %v776 = vsel %vm520, %v294, 0.0
          %v777 = vsel %vm521, %v298, 0.0
          %v778 = vsel %vm522, %v302, 0.0
          %v779 = vsel %vm523, %v306, 0.0
          %v780 = vsel %vm524, %v310, 0.0
          %v781 = vsel %vm525, %v314, 0.0
          %v782 = vsel %vm526, %v318, 0.0
          %v783 = vsel %vm527, %v290, 0.0
          %v784 = vsel %vm528, %v294, 0.0
          %v785 = vsel %vm529, %v298, 0.0
          %v786 = vsel %vm530, %v302, 0.0
          %v787 = vsel %vm531, %v306, 0.0
          %v788 = vsel %vm532, %v310, 0.0
          %v789 = vsel %vm533, %v314, 0.0
          %v790 = vsel %vm534, %v318, 0.0
          %v791 = vsel %vm535, %v290, 0.0
          %v792 = vsel %vm536, %v294, 0.0
          %v793 = vsel %vm537, %v298, 0.0
          %v794 = vsel %vm538, %v302, 0.0
          %v795 = vsel %vm539, %v306, 0.0
          %v796 = vsel %vm540, %v310, 0.0
          %v797 = vsel %vm541, %v314, 0.0
          %v798 = vsel %vm542, %v318, 0.0
          %v799 = vsel %vm543, %v290, 0.0
          %v800 = vsel %vm544, %v294, 0.0
          %v801 = vsel %vm545, %v298, 0.0
          %v802 = vsel %vm546, %v302, 0.0
          %v803 = vsel %vm547, %v306, 0.0
          %v804 = vsel %vm548, %v310, 0.0
          %v805 = vsel %vm549, %v314, 0.0
          %v806 = vsel %vm550, %v318, 0.0
          %v807 = vsel %vm551, %v290, 0.0
          %v808 = vsel %vm552, %v294, 0.0
          %v809 = vsel %vm553, %v298, 0.0
          %v810 = vsel %vm554, %v302, 0.0
          %v811 = vsel %vm555, %v306, 0.0
          %v812 = vsel %vm556, %v310, 0.0
          %v813 = vsel %vm557, %v314, 0.0
          %v814 = vsel %vm558, %v318, 0.0
          %v815 = vsel %vm559, %v290, 0.0
          %v816 = vsel %vm560, %v294, 0.0
          %v817 = vsel %vm561, %v298, 0.0
          %v818 = vsel %vm562, %v302, 0.0
          %v819 = vsel %vm563, %v306, 0.0
          %v820 = vsel %vm564, %v310, 0.0
          %v821 = vsel %vm565, %v314, 0.0
          %v822 = vsel %vm566, %v318, 0.0
          %v823 = vsel %vm567, %v290, 0.0
          %v824 = vsel %vm568, %v294, 0.0
          %v825 = vsel %vm569, %v298, 0.0
          %v826 = vsel %vm570, %v302, 0.0
          %v827 = vsel %vm571, %v306, 0.0
          %v828 = vsel %vm572, %v310, 0.0
          %v829 = vsel %vm573, %v314, 0.0
          %v830 = vsel %vm574, %v318, 0.0
          %v831 = vsel %vm575, %v290, 0.0
          %v832 = vsel %vm576, %v294, 0.0
          %v833 = vsel %vm577, %v298, 0.0
          %v834 = vsel %vm578, %v302, 0.0
          %v835 = vsel %vm579, %v306, 0.0
          %v836 = vsel %vm580, %v310, 0.0
          %v837 = vsel %vm581, %v314, 0.0
          %v838 = vsel %vm582, %v318, 0.0
          %v839 = vsel %vm583, %v290, 0.0
          %v840 = vsel %vm584, %v294, 0.0
          %v841 = vsel %vm585, %v298, 0.0
          %v842 = vsel %vm586, %v302, 0.0
          %v843 = vsel %vm587, %v306, 0.0
          %v844 = vsel %vm588, %v310, 0.0
          %v845 = vsel %vm589, %v314, 0.0
          %v846 = vsel %vm590, %v318, 0.0
          %v847 = vsel %vm591, %v290, 0.0
          %v848 = vsel %vm592, %v294, 0.0
          %v849 = vsel %vm593, %v298, 0.0
          %v850 = vsel %vm594, %v302, 0.0
          %v851 = vsel %vm595, %v306, 0.0
          %v852 = vsel %vm596, %v310, 0.0
          %v853 = vsel %vm597, %v314, 0.0
          %v854 = vsel %vm598, %v318, 0.0
          %v855 = vsel %vm599, %v290, 0.0
          %v856 = vsel %vm600, %v294, 0.0
          %v857 = vsel %vm601, %v298, 0.0
          %v858 = vsel %vm602, %v302, 0.0
          %v859 = vsel %vm603, %v306, 0.0
          %v860 = vsel %vm604, %v310, 0.0
          %v861 = vsel %vm605, %v314, 0.0
          %v862 = vsel %vm606, %v318, 0.0
          %v863 = vsel %vm607, %v290, 0.0
          %v864 = vsel %vm608, %v294, 0.0
          %v865 = vsel %vm609, %v298, 0.0
          %v866 = vsel %vm610, %v302, 0.0
          %v867 = vsel %vm611, %v306, 0.0
          %v868 = vsel %vm612, %v310, 0.0
          %v869 = vsel %vm613, %v314, 0.0
          %v870 = vsel %vm614, %v318, 0.0
          %v871 = vld [vmem:[#allocation2] sm:$0xff]
          %v873 = vlaneseq
          %v874 = vshrl.u32 %v873, 7
          %v875 = vsub.s32 0, %v874
          %v876 = vrot.slane %v871, %v875
          %v877 = vlaneseq
          %v878 = vshrl.u32 %v877, 7
          %v879 = vsub.s32 1, %v878
          %v880 = vrot.slane %v871, %v879
          %v881 = vlaneseq
          %v882 = vshrl.u32 %v881, 7
          %v883 = vsub.s32 2, %v882
          %v884 = vrot.slane %v871, %v883
          %v885 = vlaneseq
          %v886 = vshrl.u32 %v885, 7
          %v887 = vsub.s32 3, %v886
          %v888 = vrot.slane %v871, %v887
          %v889 = vlaneseq
          %v890 = vshrl.u32 %v889, 7
          %v891 = vsub.s32 4, %v890
          %v892 = vrot.slane %v871, %v891
          %v893 = vlaneseq
          %v894 = vshrl.u32 %v893, 7
          %v895 = vsub.s32 5, %v894
          %v896 = vrot.slane %v871, %v895
          %v897 = vlaneseq
          %v898 = vshrl.u32 %v897, 7
          %v899 = vsub.s32 6, %v898
          %v900 = vrot.slane %v871, %v899
          %v901 = vlaneseq
          %v902 = vshrl.u32 %v901, 7
          %v903 = vsub.s32 7, %v902
          %v904 = vrot.slane %v871, %v903
          %vm913 = vcmp.lt.s32.totalorder %v235, 1
          %vm914 = vcmp.lt.s32.totalorder %v236, 1
          %vm915 = vcmp.lt.s32.totalorder %v237, 1
          %vm916 = vcmp.lt.s32.totalorder %v238, 1
          %vm917 = vcmp.lt.s32.totalorder %v239, 1
          %vm918 = vcmp.lt.s32.totalorder %v240, 1
          %vm919 = vcmp.lt.s32.totalorder %v241, 1
          %vm920 = vcmp.lt.s32.totalorder %v242, 1
          %vm921 = vcmp.lt.s32.totalorder %v243, 1
          %vm922 = vcmp.lt.s32.totalorder %v244, 1
          %vm923 = vcmp.lt.s32.totalorder %v245, 1
          %vm924 = vcmp.lt.s32.totalorder %v246, 1
          %vm925 = vcmp.lt.s32.totalorder %v247, 1
          %vm926 = vcmp.lt.s32.totalorder %v248, 1
          %vm927 = vcmp.lt.s32.totalorder %v249, 1
          %vm928 = vcmp.lt.s32.totalorder %v250, 1
          %vm929 = vcmp.lt.s32.totalorder %v251, 1
          %vm930 = vcmp.lt.s32.totalorder %v252, 1
          %vm931 = vcmp.lt.s32.totalorder %v253, 1
          %vm932 = vcmp.lt.s32.totalorder %v254, 1
          %vm933 = vcmp.lt.s32.totalorder %v255, 1
          %vm934 = vcmp.lt.s32.totalorder %v256, 1
          %vm935 = vcmp.lt.s32.totalorder %v257, 1
          %vm936 = vcmp.lt.s32.totalorder %v258, 1
          %vm937 = vcmp.lt.s32.totalorder %v259, 1
          %vm938 = vcmp.lt.s32.totalorder %v260, 1
          %vm939 = vcmp.lt.s32.totalorder %v261, 1
          %vm940 = vcmp.lt.s32.totalorder %v262, 1
          %vm941 = vcmp.lt.s32.totalorder %v263, 1
          %vm942 = vcmp.lt.s32.totalorder %v264, 1
          %vm943 = vcmp.lt.s32.totalorder %v265, 1
          %vm944 = vcmp.lt.s32.totalorder %v266, 1
          %v945 = vsel %vm913, %v876, %v615
          %v946 = vsel %vm913, %v880, %v616
          %v947 = vsel %vm913, %v884, %v617
          %v948 = vsel %vm913, %v888, %v618
          %v949 = vsel %vm913, %v892, %v619
          %v950 = vsel %vm913, %v896, %v620
          %v951 = vsel %vm913, %v900, %v621
          %v952 = vsel %vm913, %v904, %v622
          %v953 = vsel %vm914, %v876, %v623
          %v954 = vsel %vm914, %v880, %v624
          %v955 = vsel %vm914, %v884, %v625
          %v956 = vsel %vm914, %v888, %v626
          %v957 = vsel %vm914, %v892, %v627
          %v958 = vsel %vm914, %v896, %v628
          %v959 = vsel %vm914, %v900, %v629
          %v960 = vsel %vm914, %v904, %v630
          %v961 = vsel %vm915, %v876, %v631
          %v962 = vsel %vm915, %v880, %v632
          %v963 = vsel %vm915, %v884, %v633
          %v964 = vsel %vm915, %v888, %v634
          %v965 = vsel %vm915, %v892, %v635
          %v966 = vsel %vm915, %v896, %v636
          %v967 = vsel %vm915, %v900, %v637
          %v968 = vsel %vm915, %v904, %v638
          %v969 = vsel %vm916, %v876, %v639
          %v970 = vsel %vm916, %v880, %v640
          %v971 = vsel %vm916, %v884, %v641
          %v972 = vsel %vm916, %v888, %v642
          %v973 = vsel %vm916, %v892, %v643
          %v974 = vsel %vm916, %v896, %v644
          %v975 = vsel %vm916, %v900, %v645
          %v976 = vsel %vm916, %v904, %v646
          %v977 = vsel %vm917, %v876, %v647
          %v978 = vsel %vm917, %v880, %v648
          %v979 = vsel %vm917, %v884, %v649
          %v980 = vsel %vm917, %v888, %v650
          %v981 = vsel %vm917, %v892, %v651
          %v982 = vsel %vm917, %v896, %v652
          %v983 = vsel %vm917, %v900, %v653
          %v984 = vsel %vm917, %v904, %v654
          %v985 = vsel %vm918, %v876, %v655
          %v986 = vsel %vm918, %v880, %v656
          %v987 = vsel %vm918, %v884, %v657
          %v988 = vsel %vm918, %v888, %v658
          %v989 = vsel %vm918, %v892, %v659
          %v990 = vsel %vm918, %v896, %v660
          %v991 = vsel %vm918, %v900, %v661
          %v992 = vsel %vm918, %v904, %v662
          %v993 = vsel %vm919, %v876, %v663
          %v994 = vsel %vm919, %v880, %v664
          %v995 = vsel %vm919, %v884, %v665
          %v996 = vsel %vm919, %v888, %v666
          %v997 = vsel %vm919, %v892, %v667
          %v998 = vsel %vm919, %v896, %v668
          %v999 = vsel %vm919, %v900, %v669
          %v1000 = vsel %vm919, %v904, %v670
          %v1001 = vsel %vm920, %v876, %v671
          %v1002 = vsel %vm920, %v880, %v672
          %v1003 = vsel %vm920, %v884, %v673
          %v1004 = vsel %vm920, %v888, %v674
          %v1005 = vsel %vm920, %v892, %v675
          %v1006 = vsel %vm920, %v896, %v676
          %v1007 = vsel %vm920, %v900, %v677
          %v1008 = vsel %vm920, %v904, %v678
          %v1009 = vsel %vm921, %v876, %v679
          %v1010 = vsel %vm921, %v880, %v680
          %v1011 = vsel %vm921, %v884, %v681
          %v1012 = vsel %vm921, %v888, %v682
          %v1013 = vsel %vm921, %v892, %v683
          %v1014 = vsel %vm921, %v896, %v684
          %v1015 = vsel %vm921, %v900, %v685
          %v1016 = vsel %vm921, %v904, %v686
          %v1017 = vsel %vm922, %v876, %v687
          %v1018 = vsel %vm922, %v880, %v688
          %v1019 = vsel %vm922, %v884, %v689
          %v1020 = vsel %vm922, %v888, %v690
          %v1021 = vsel %vm922, %v892, %v691
          %v1022 = vsel %vm922, %v896, %v692
          %v1023 = vsel %vm922, %v900, %v693
          %v1024 = vsel %vm922, %v904, %v694
          %v1025 = vsel %vm923, %v876, %v695
          %v1026 = vsel %vm923, %v880, %v696
          %v1027 = vsel %vm923, %v884, %v697
          %v1028 = vsel %vm923, %v888, %v698
          %v1029 = vsel %vm923, %v892, %v699
          %v1030 = vsel %vm923, %v896, %v700
          %v1031 = vsel %vm923, %v900, %v701
          %v1032 = vsel %vm923, %v904, %v702
          %v1033 = vsel %vm924, %v876, %v703
          %v1034 = vsel %vm924, %v880, %v704
          %v1035 = vsel %vm924, %v884, %v705
          %v1036 = vsel %vm924, %v888, %v706
          %v1037 = vsel %vm924, %v892, %v707
          %v1038 = vsel %vm924, %v896, %v708
          %v1039 = vsel %vm924, %v900, %v709
          %v1040 = vsel %vm924, %v904, %v710
          %v1041 = vsel %vm925, %v876, %v711
          %v1042 = vsel %vm925, %v880, %v712
          %v1043 = vsel %vm925, %v884, %v713
          %v1044 = vsel %vm925, %v888, %v714
          %v1045 = vsel %vm925, %v892, %v715
          %v1046 = vsel %vm925, %v896, %v716
          %v1047 = vsel %vm925, %v900, %v717
          %v1048 = vsel %vm925, %v904, %v718
          %v1049 = vsel %vm926, %v876, %v719
          %v1050 = vsel %vm926, %v880, %v720
          %v1051 = vsel %vm926, %v884, %v721
          %v1052 = vsel %vm926, %v888, %v722
          %v1053 = vsel %vm926, %v892, %v723
          %v1054 = vsel %vm926, %v896, %v724
          %v1055 = vsel %vm926, %v900, %v725
          %v1056 = vsel %vm926, %v904, %v726
          %v1057 = vsel %vm927, %v876, %v727
          %v1058 = vsel %vm927, %v880, %v728
          %v1059 = vsel %vm927, %v884, %v729
          %v1060 = vsel %vm927, %v888, %v730
          %v1061 = vsel %vm927, %v892, %v731
          %v1062 = vsel %vm927, %v896, %v732
          %v1063 = vsel %vm927, %v900, %v733
          %v1064 = vsel %vm927, %v904, %v734
          %v1065 = vsel %vm928, %v876, %v735
          %v1066 = vsel %vm928, %v880, %v736
          %v1067 = vsel %vm928, %v884, %v737
          %v1068 = vsel %vm928, %v888, %v738
          %v1069 = vsel %vm928, %v892, %v739
          %v1070 = vsel %vm928, %v896, %v740
          %v1071 = vsel %vm928, %v900, %v741
          %v1072 = vsel %vm928, %v904, %v742
          %v1073 = vsel %vm929, %v876, %v743
          %v1074 = vsel %vm929, %v880, %v744
          %v1075 = vsel %vm929, %v884, %v745
          %v1076 = vsel %vm929, %v888, %v746
          %v1077 = vsel %vm929, %v892, %v747
          %v1078 = vsel %vm929, %v896, %v748
          %v1079 = vsel %vm929, %v900, %v749
          %v1080 = vsel %vm929, %v904, %v750
          %v1081 = vsel %vm930, %v876, %v751
          %v1082 = vsel %vm930, %v880, %v752
          %v1083 = vsel %vm930, %v884, %v753
          %v1084 = vsel %vm930, %v888, %v754
          %v1085 = vsel %vm930, %v892, %v755
          %v1086 = vsel %vm930, %v896, %v756
          %v1087 = vsel %vm930, %v900, %v757
          %v1088 = vsel %vm930, %v904, %v758
          %v1089 = vsel %vm931, %v876, %v759
          %v1090 = vsel %vm931, %v880, %v760
          %v1091 = vsel %vm931, %v884, %v761
          %v1092 = vsel %vm931, %v888, %v762
          %v1093 = vsel %vm931, %v892, %v763
          %v1094 = vsel %vm931, %v896, %v764
          %v1095 = vsel %vm931, %v900, %v765
          %v1096 = vsel %vm931, %v904, %v766
          %v1097 = vsel %vm932, %v876, %v767
          %v1098 = vsel %vm932, %v880, %v768
          %v1099 = vsel %vm932, %v884, %v769
          %v1100 = vsel %vm932, %v888, %v770
          %v1101 = vsel %vm932, %v892, %v771
          %v1102 = vsel %vm932, %v896, %v772
          %v1103 = vsel %vm932, %v900, %v773
          %v1104 = vsel %vm932, %v904, %v774
          %v1105 = vsel %vm933, %v876, %v775
          %v1106 = vsel %vm933, %v880, %v776
          %v1107 = vsel %vm933, %v884, %v777
          %v1108 = vsel %vm933, %v888, %v778
          %v1109 = vsel %vm933, %v892, %v779
          %v1110 = vsel %vm933, %v896, %v780
          %v1111 = vsel %vm933, %v900, %v781
          %v1112 = vsel %vm933, %v904, %v782
          %v1113 = vsel %vm934, %v876, %v783
          %v1114 = vsel %vm934, %v880, %v784
          %v1115 = vsel %vm934, %v884, %v785
          %v1116 = vsel %vm934, %v888, %v786
          %v1117 = vsel %vm934, %v892, %v787
          %v1118 = vsel %vm934, %v896, %v788
          %v1119 = vsel %vm934, %v900, %v789
          %v1120 = vsel %vm934, %v904, %v790
          %v1121 = vsel %vm935, %v876, %v791
          %v1122 = vsel %vm935, %v880, %v792
          %v1123 = vsel %vm935, %v884, %v793
          %v1124 = vsel %vm935, %v888, %v794
          %v1125 = vsel %vm935, %v892, %v795
          %v1126 = vsel %vm935, %v896, %v796
          %v1127 = vsel %vm935, %v900, %v797
          %v1128 = vsel %vm935, %v904, %v798
          %v1129 = vsel %vm936, %v876, %v799
          %v1130 = vsel %vm936, %v880, %v800
          %v1131 = vsel %vm936, %v884, %v801
          %v1132 = vsel %vm936, %v888, %v802
          %v1133 = vsel %vm936, %v892, %v803
          %v1134 = vsel %vm936, %v896, %v804
          %v1135 = vsel %vm936, %v900, %v805
          %v1136 = vsel %vm936, %v904, %v806
          %v1137 = vsel %vm937, %v876, %v807
          %v1138 = vsel %vm937, %v880, %v808
          %v1139 = vsel %vm937, %v884, %v809
          %v1140 = vsel %vm937, %v888, %v810
          %v1141 = vsel %vm937, %v892, %v811
          %v1142 = vsel %vm937, %v896, %v812
          %v1143 = vsel %vm937, %v900, %v813
          %v1144 = vsel %vm937, %v904, %v814
          %v1145 = vsel %vm938, %v876, %v815
          %v1146 = vsel %vm938, %v880, %v816
          %v1147 = vsel %vm938, %v884, %v817
          %v1148 = vsel %vm938, %v888, %v818
          %v1149 = vsel %vm938, %v892, %v819
          %v1150 = vsel %vm938, %v896, %v820
          %v1151 = vsel %vm938, %v900, %v821
          %v1152 = vsel %vm938, %v904, %v822
          %v1153 = vsel %vm939, %v876, %v823
          %v1154 = vsel %vm939, %v880, %v824
          %v1155 = vsel %vm939, %v884, %v825
          %v1156 = vsel %vm939, %v888, %v826
          %v1157 = vsel %vm939, %v892, %v827
          %v1158 = vsel %vm939, %v896, %v828
          %v1159 = vsel %vm939, %v900, %v829
          %v1160 = vsel %vm939, %v904, %v830
          %v1161 = vsel %vm940, %v876, %v831
          %v1162 = vsel %vm940, %v880, %v832
          %v1163 = vsel %vm940, %v884, %v833
          %v1164 = vsel %vm940, %v888, %v834
          %v1165 = vsel %vm940, %v892, %v835
          %v1166 = vsel %vm940, %v896, %v836
          %v1167 = vsel %vm940, %v900, %v837
          %v1168 = vsel %vm940, %v904, %v838
          %v1169 = vsel %vm941, %v876, %v839
          %v1170 = vsel %vm941, %v880, %v840
          %v1171 = vsel %vm941, %v884, %v841
          %v1172 = vsel %vm941, %v888, %v842
          %v1173 = vsel %vm941, %v892, %v843
          %v1174 = vsel %vm941, %v896, %v844
          %v1175 = vsel %vm941, %v900, %v845
          %v1176 = vsel %vm941, %v904, %v846
          %v1177 = vsel %vm942, %v876, %v847
          %v1178 = vsel %vm942, %v880, %v848
          %v1179 = vsel %vm942, %v884, %v849
          %v1180 = vsel %vm942, %v888, %v850
          %v1181 = vsel %vm942, %v892, %v851
          %v1182 = vsel %vm942, %v896, %v852
          %v1183 = vsel %vm942, %v900, %v853
          %v1184 = vsel %vm942, %v904, %v854
          %v1185 = vsel %vm943, %v876, %v855
          %v1186 = vsel %vm943, %v880, %v856
          %v1187 = vsel %vm943, %v884, %v857
          %v1188 = vsel %vm943, %v888, %v858
          %v1189 = vsel %vm943, %v892, %v859
          %v1190 = vsel %vm943, %v896, %v860
          %v1191 = vsel %vm943, %v900, %v861
          %v1192 = vsel %vm943, %v904, %v862
          %v1193 = vsel %vm944, %v876, %v863
          %v1194 = vsel %vm944, %v880, %v864
          %v1195 = vsel %vm944, %v884, %v865
          %v1196 = vsel %vm944, %v888, %v866
          %v1197 = vsel %vm944, %v892, %v867
          %v1198 = vsel %vm944, %v896, %v868
          %v1199 = vsel %vm944, %v900, %v869
          %v1200 = vsel %vm944, %v904, %v870
          %1201 = vst [vmem:[%s177] sm:$0xff] %v945
          %1202 = vst [vmem:[%s177 + $0x8] sm:$0xff] %v946
          %1203 = vst [vmem:[%s177 + $0x10] sm:$0xff] %v947
          %1204 = vst [vmem:[%s177 + $0x18] sm:$0xff] %v948
          %1205 = vst [vmem:[%s177 + $0x20] sm:$0xff] %v949
          %1206 = vst [vmem:[%s177 + $0x28] sm:$0xff] %v950
          %1207 = vst [vmem:[%s177 + $0x30] sm:$0xff] %v951
          %1208 = vst [vmem:[%s177 + $0x38] sm:$0xff] %v952
          %1209 = vst [vmem:[%s177 + $0x40] sm:$0xff] %v953
          %1210 = vst [vmem:[%s177 + $0x48] sm:$0xff] %v954
          %1211 = vst [vmem:[%s177 + $0x50] sm:$0xff] %v955
          %1212 = vst [vmem:[%s177 + $0x58] sm:$0xff] %v956
          %1213 = vst [vmem:[%s177 + $0x60] sm:$0xff] %v957
          %1214 = vst [vmem:[%s177 + $0x68] sm:$0xff] %v958
          %1215 = vst [vmem:[%s177 + $0x70] sm:$0xff] %v959
          %1216 = vst [vmem:[%s177 + $0x78] sm:$0xff] %v960
          %1217 = vst [vmem:[%s177 + $0x80] sm:$0xff] %v961
          %1218 = vst [vmem:[%s177 + $0x88] sm:$0xff] %v962
          %1219 = vst [vmem:[%s177 + $0x90] sm:$0xff] %v963
          %1220 = vst [vmem:[%s177 + $0x98] sm:$0xff] %v964
          %1221 = vst [vmem:[%s177 + $0xa0] sm:$0xff] %v965
          %1222 = vst [vmem:[%s177 + $0xa8] sm:$0xff] %v966
          %1223 = vst [vmem:[%s177 + $0xb0] sm:$0xff] %v967
          %1224 = vst [vmem:[%s177 + $0xb8] sm:$0xff] %v968
          %1225 = vst [vmem:[%s177 + $0xc0] sm:$0xff] %v969
          %1226 = vst [vmem:[%s177 + $0xc8] sm:$0xff] %v970
          %1227 = vst [vmem:[%s177 + $0xd0] sm:$0xff] %v971
          %1228 = vst [vmem:[%s177 + $0xd8] sm:$0xff] %v972
          %1229 = vst [vmem:[%s177 + $0xe0] sm:$0xff] %v973
          %1230 = vst [vmem:[%s177 + $0xe8] sm:$0xff] %v974
          %1231 = vst [vmem:[%s177 + $0xf0] sm:$0xff] %v975
          %1232 = vst [vmem:[%s177 + $0xf8] sm:$0xff] %v976
          %1233 = vst [vmem:[%s177 + $0x100] sm:$0xff] %v977
          %1234 = vst [vmem:[%s177 + $0x108] sm:$0xff] %v978
          %1235 = vst [vmem:[%s177 + $0x110] sm:$0xff] %v979
          %1236 = vst [vmem:[%s177 + $0x118] sm:$0xff] %v980
          %1237 = vst [vmem:[%s177 + $0x120] sm:$0xff] %v981
          %1238 = vst [vmem:[%s177 + $0x128] sm:$0xff] %v982
          %1239 = vst [vmem:[%s177 + $0x130] sm:$0xff] %v983
          %1240 = vst [vmem:[%s177 + $0x138] sm:$0xff] %v984
          %1241 = vst [vmem:[%s177 + $0x140] sm:$0xff] %v985
          %1242 = vst [vmem:[%s177 + $0x148] sm:$0xff] %v986
          %1243 = vst [vmem:[%s177 + $0x150] sm:$0xff] %v987
          %1244 = vst [vmem:[%s177 + $0x158] sm:$0xff] %v988
          %1245 = vst [vmem:[%s177 + $0x160] sm:$0xff] %v989
          %1246 = vst [vmem:[%s177 + $0x168] sm:$0xff] %v990
          %1247 = vst [vmem:[%s177 + $0x170] sm:$0xff] %v991
          %1248 = vst [vmem:[%s177 + $0x178] sm:$0xff] %v992
          %1249 = vst [vmem:[%s177 + $0x180] sm:$0xff] %v993
          %1250 = vst [vmem:[%s177 + $0x188] sm:$0xff] %v994
          %1251 = vst [vmem:[%s177 + $0x190] sm:$0xff] %v995
          %1252 = vst [vmem:[%s177 + $0x198] sm:$0xff] %v996
          %1253 = vst [vmem:[%s177 + $0x1a0] sm:$0xff] %v997
          %1254 = vst [vmem:[%s177 + $0x1a8] sm:$0xff] %v998
          %1255 = vst [vmem:[%s177 + $0x1b0] sm:$0xff] %v999
          %1256 = vst [vmem:[%s177 + $0x1b8] sm:$0xff] %v1000
          %1257 = vst [vmem:[%s177 + $0x1c0] sm:$0xff] %v1001
          %1258 = vst [vmem:[%s177 + $0x1c8] sm:$0xff] %v1002
          %1259 = vst [vmem:[%s177 + $0x1d0] sm:$0xff] %v1003
          %1260 = vst [vmem:[%s177 + $0x1d8] sm:$0xff] %v1004
          %1261 = vst [vmem:[%s177 + $0x1e0] sm:$0xff] %v1005
          %1262 = vst [vmem:[%s177 + $0x1e8] sm:$0xff] %v1006
          %1263 = vst [vmem:[%s177 + $0x1f0] sm:$0xff] %v1007
          %1264 = vst [vmem:[%s177 + $0x1f8] sm:$0xff] %v1008
          %1265 = vst [vmem:[%s177 + $0x200] sm:$0xff] %v1009
          %1266 = vst [vmem:[%s177 + $0x208] sm:$0xff] %v1010
          %1267 = vst [vmem:[%s177 + $0x210] sm:$0xff] %v1011
          %1268 = vst [vmem:[%s177 + $0x218] sm:$0xff] %v1012
          %1269 = vst [vmem:[%s177 + $0x220] sm:$0xff] %v1013
          %1270 = vst [vmem:[%s177 + $0x228] sm:$0xff] %v1014
          %1271 = vst [vmem:[%s177 + $0x230] sm:$0xff] %v1015
          %1272 = vst [vmem:[%s177 + $0x238] sm:$0xff] %v1016
          %1273 = vst [vmem:[%s177 + $0x240] sm:$0xff] %v1017
          %1274 = vst [vmem:[%s177 + $0x248] sm:$0xff] %v1018
          %1275 = vst [vmem:[%s177 + $0x250] sm:$0xff] %v1019
          %1276 = vst [vmem:[%s177 + $0x258] sm:$0xff] %v1020
          %1277 = vst [vmem:[%s177 + $0x260] sm:$0xff] %v1021
          %1278 = vst [vmem:[%s177 + $0x268] sm:$0xff] %v1022
          %1279 = vst [vmem:[%s177 + $0x270] sm:$0xff] %v1023
          %1280 = vst [vmem:[%s177 + $0x278] sm:$0xff] %v1024
          %1281 = vst [vmem:[%s177 + $0x280] sm:$0xff] %v1025
          %1282 = vst [vmem:[%s177 + $0x288] sm:$0xff] %v1026
          %1283 = vst [vmem:[%s177 + $0x290] sm:$0xff] %v1027
          %1284 = vst [vmem:[%s177 + $0x298] sm:$0xff] %v1028
          %1285 = vst [vmem:[%s177 + $0x2a0] sm:$0xff] %v1029
          %1286 = vst [vmem:[%s177 + $0x2a8] sm:$0xff] %v1030
          %1287 = vst [vmem:[%s177 + $0x2b0] sm:$0xff] %v1031
          %1288 = vst [vmem:[%s177 + $0x2b8] sm:$0xff] %v1032
          %1289 = vst [vmem:[%s177 + $0x2c0] sm:$0xff] %v1033
          %1290 = vst [vmem:[%s177 + $0x2c8] sm:$0xff] %v1034
          %1291 = vst [vmem:[%s177 + $0x2d0] sm:$0xff] %v1035
          %1292 = vst [vmem:[%s177 + $0x2d8] sm:$0xff] %v1036
          %1293 = vst [vmem:[%s177 + $0x2e0] sm:$0xff] %v1037
          %1294 = vst [vmem:[%s177 + $0x2e8] sm:$0xff] %v1038
          %1295 = vst [vmem:[%s177 + $0x2f0] sm:$0xff] %v1039
          %1296 = vst [vmem:[%s177 + $0x2f8] sm:$0xff] %v1040
          %1297 = vst [vmem:[%s177 + $0x300] sm:$0xff] %v1041
          %1298 = vst [vmem:[%s177 + $0x308] sm:$0xff] %v1042
          %1299 = vst [vmem:[%s177 + $0x310] sm:$0xff] %v1043
          %1300 = vst [vmem:[%s177 + $0x318] sm:$0xff] %v1044
          %1301 = vst [vmem:[%s177 + $0x320] sm:$0xff] %v1045
          %1302 = vst [vmem:[%s177 + $0x328] sm:$0xff] %v1046
          %1303 = vst [vmem:[%s177 + $0x330] sm:$0xff] %v1047
          %1304 = vst [vmem:[%s177 + $0x338] sm:$0xff] %v1048
          %1305 = vst [vmem:[%s177 + $0x340] sm:$0xff] %v1049
          %1306 = vst [vmem:[%s177 + $0x348] sm:$0xff] %v1050
          %1307 = vst [vmem:[%s177 + $0x350] sm:$0xff] %v1051
          %1308 = vst [vmem:[%s177 + $0x358] sm:$0xff] %v1052
          %1309 = vst [vmem:[%s177 + $0x360] sm:$0xff] %v1053
          %1310 = vst [vmem:[%s177 + $0x368] sm:$0xff] %v1054
          %1311 = vst [vmem:[%s177 + $0x370] sm:$0xff] %v1055
          %1312 = vst [vmem:[%s177 + $0x378] sm:$0xff] %v1056
          %1313 = vst [vmem:[%s177 + $0x380] sm:$0xff] %v1057
          %1314 = vst [vmem:[%s177 + $0x388] sm:$0xff] %v1058
          %1315 = vst [vmem:[%s177 + $0x390] sm:$0xff] %v1059
          %1316 = vst [vmem:[%s177 + $0x398] sm:$0xff] %v1060
          %1317 = vst [vmem:[%s177 + $0x3a0] sm:$0xff] %v1061
          %1318 = vst [vmem:[%s177 + $0x3a8] sm:$0xff] %v1062
          %1319 = vst [vmem:[%s177 + $0x3b0] sm:$0xff] %v1063
          %1320 = vst [vmem:[%s177 + $0x3b8] sm:$0xff] %v1064
          %1321 = vst [vmem:[%s177 + $0x3c0] sm:$0xff] %v1065
          %1322 = vst [vmem:[%s177 + $0x3c8] sm:$0xff] %v1066
          %1323 = vst [vmem:[%s177 + $0x3d0] sm:$0xff] %v1067
          %1324 = vst [vmem:[%s177 + $0x3d8] sm:$0xff] %v1068
          %1325 = vst [vmem:[%s177 + $0x3e0] sm:$0xff] %v1069
          %1326 = vst [vmem:[%s177 + $0x3e8] sm:$0xff] %v1070
          %1327 = vst [vmem:[%s177 + $0x3f0] sm:$0xff] %v1071
          %1328 = vst [vmem:[%s177 + $0x3f8] sm:$0xff] %v1072
          %1329 = vst [vmem:[%s177 + $0x400] sm:$0xff] %v1073
          %1330 = vst [vmem:[%s177 + $0x408] sm:$0xff] %v1074
          %1331 = vst [vmem:[%s177 + $0x410] sm:$0xff] %v1075
          %1332 = vst [vmem:[%s177 + $0x418] sm:$0xff] %v1076
          %1333 = vst [vmem:[%s177 + $0x420] sm:$0xff] %v1077
          %1334 = vst [vmem:[%s177 + $0x428] sm:$0xff] %v1078
          %1335 = vst [vmem:[%s177 + $0x430] sm:$0xff] %v1079
          %1336 = vst [vmem:[%s177 + $0x438] sm:$0xff] %v1080
          %1337 = vst [vmem:[%s177 + $0x440] sm:$0xff] %v1081
          %1338 = vst [vmem:[%s177 + $0x448] sm:$0xff] %v1082
          %1339 = vst [vmem:[%s177 + $0x450] sm:$0xff] %v1083
          %1340 = vst [vmem:[%s177 + $0x458] sm:$0xff] %v1084
          %1341 = vst [vmem:[%s177 + $0x460] sm:$0xff] %v1085
          %1342 = vst [vmem:[%s177 + $0x468] sm:$0xff] %v1086
          %1343 = vst [vmem:[%s177 + $0x470] sm:$0xff] %v1087
          %1344 = vst [vmem:[%s177 + $0x478] sm:$0xff] %v1088
          %1345 = vst [vmem:[%s177 + $0x480] sm:$0xff] %v1089
          %1346 = vst [vmem:[%s177 + $0x488] sm:$0xff] %v1090
          %1347 = vst [vmem:[%s177 + $0x490] sm:$0xff] %v1091
          %1348 = vst [vmem:[%s177 + $0x498] sm:$0xff] %v1092
          %1349 = vst [vmem:[%s177 + $0x4a0] sm:$0xff] %v1093
          %1350 = vst [vmem:[%s177 + $0x4a8] sm:$0xff] %v1094
          %1351 = vst [vmem:[%s177 + $0x4b0] sm:$0xff] %v1095
          %1352 = vst [vmem:[%s177 + $0x4b8] sm:$0xff] %v1096
          %1353 = vst [vmem:[%s177 + $0x4c0] sm:$0xff] %v1097
          %1354 = vst [vmem:[%s177 + $0x4c8] sm:$0xff] %v1098
          %1355 = vst [vmem:[%s177 + $0x4d0] sm:$0xff] %v1099
          %1356 = vst [vmem:[%s177 + $0x4d8] sm:$0xff] %v1100
          %1357 = vst [vmem:[%s177 + $0x4e0] sm:$0xff] %v1101
          %1358 = vst [vmem:[%s177 + $0x4e8] sm:$0xff] %v1102
          %1359 = vst [vmem:[%s177 + $0x4f0] sm:$0xff] %v1103
          %1360 = vst [vmem:[%s177 + $0x4f8] sm:$0xff] %v1104
          %1361 = vst [vmem:[%s177 + $0x500] sm:$0xff] %v1105
          %1362 = vst [vmem:[%s177 + $0x508] sm:$0xff] %v1106
          %1363 = vst [vmem:[%s177 + $0x510] sm:$0xff] %v1107
          %1364 = vst [vmem:[%s177 + $0x518] sm:$0xff] %v1108
          %1365 = vst [vmem:[%s177 + $0x520] sm:$0xff] %v1109
          %1366 = vst [vmem:[%s177 + $0x528] sm:$0xff] %v1110
          %1367 = vst [vmem:[%s177 + $0x530] sm:$0xff] %v1111
          %1368 = vst [vmem:[%s177 + $0x538] sm:$0xff] %v1112
          %1369 = vst [vmem:[%s177 + $0x540] sm:$0xff] %v1113
          %1370 = vst [vmem:[%s177 + $0x548] sm:$0xff] %v1114
          %1371 = vst [vmem:[%s177 + $0x550] sm:$0xff] %v1115
          %1372 = vst [vmem:[%s177 + $0x558] sm:$0xff] %v1116
          %1373 = vst [vmem:[%s177 + $0x560] sm:$0xff] %v1117
          %1374 = vst [vmem:[%s177 + $0x568] sm:$0xff] %v1118
          %1375 = vst [vmem:[%s177 + $0x570] sm:$0xff] %v1119
          %1376 = vst [vmem:[%s177 + $0x578] sm:$0xff] %v1120
          %1377 = vst [vmem:[%s177 + $0x580] sm:$0xff] %v1121
          %1378 = vst [vmem:[%s177 + $0x588] sm:$0xff] %v1122
          %1379 = vst [vmem:[%s177 + $0x590] sm:$0xff] %v1123
          %1380 = vst [vmem:[%s177 + $0x598] sm:$0xff] %v1124
          %1381 = vst [vmem:[%s177 + $0x5a0] sm:$0xff] %v1125
          %1382 = vst [vmem:[%s177 + $0x5a8] sm:$0xff] %v1126
          %1383 = vst [vmem:[%s177 + $0x5b0] sm:$0xff] %v1127
          %1384 = vst [vmem:[%s177 + $0x5b8] sm:$0xff] %v1128
          %1385 = vst [vmem:[%s177 + $0x5c0] sm:$0xff] %v1129
          %1386 = vst [vmem:[%s177 + $0x5c8] sm:$0xff] %v1130
          %1387 = vst [vmem:[%s177 + $0x5d0] sm:$0xff] %v1131
          %1388 = vst [vmem:[%s177 + $0x5d8] sm:$0xff] %v1132
          %1389 = vst [vmem:[%s177 + $0x5e0] sm:$0xff] %v1133
          %1390 = vst [vmem:[%s177 + $0x5e8] sm:$0xff] %v1134
          %1391 = vst [vmem:[%s177 + $0x5f0] sm:$0xff] %v1135
          %1392 = vst [vmem:[%s177 + $0x5f8] sm:$0xff] %v1136
          %1393 = vst [vmem:[%s177 + $0x600] sm:$0xff] %v1137
          %1394 = vst [vmem:[%s177 + $0x608] sm:$0xff] %v1138
          %1395 = vst [vmem:[%s177 + $0x610] sm:$0xff] %v1139
          %1396 = vst [vmem:[%s177 + $0x618] sm:$0xff] %v1140
          %1397 = vst [vmem:[%s177 + $0x620] sm:$0xff] %v1141
          %1398 = vst [vmem:[%s177 + $0x628] sm:$0xff] %v1142
          %1399 = vst [vmem:[%s177 + $0x630] sm:$0xff] %v1143
          %1400 = vst [vmem:[%s177 + $0x638] sm:$0xff] %v1144
          %1401 = vst [vmem:[%s177 + $0x640] sm:$0xff] %v1145
          %1402 = vst [vmem:[%s177 + $0x648] sm:$0xff] %v1146
          %1403 = vst [vmem:[%s177 + $0x650] sm:$0xff] %v1147
          %1404 = vst [vmem:[%s177 + $0x658] sm:$0xff] %v1148
          %1405 = vst [vmem:[%s177 + $0x660] sm:$0xff] %v1149
          %1406 = vst [vmem:[%s177 + $0x668] sm:$0xff] %v1150
          %1407 = vst [vmem:[%s177 + $0x670] sm:$0xff] %v1151
          %1408 = vst [vmem:[%s177 + $0x678] sm:$0xff] %v1152
          %1409 = vst [vmem:[%s177 + $0x680] sm:$0xff] %v1153
          %1410 = vst [vmem:[%s177 + $0x688] sm:$0xff] %v1154
          %1411 = vst [vmem:[%s177 + $0x690] sm:$0xff] %v1155
          %1412 = vst [vmem:[%s177 + $0x698] sm:$0xff] %v1156
          %1413 = vst [vmem:[%s177 + $0x6a0] sm:$0xff] %v1157
          %1414 = vst [vmem:[%s177 + $0x6a8] sm:$0xff] %v1158
          %1415 = vst [vmem:[%s177 + $0x6b0] sm:$0xff] %v1159
          %1416 = vst [vmem:[%s177 + $0x6b8] sm:$0xff] %v1160
          %1417 = vst [vmem:[%s177 + $0x6c0] sm:$0xff] %v1161
          %1418 = vst [vmem:[%s177 + $0x6c8] sm:$0xff] %v1162
          %1419 = vst [vmem:[%s177 + $0x6d0] sm:$0xff] %v1163
          %1420 = vst [vmem:[%s177 + $0x6d8] sm:$0xff] %v1164
          %1421 = vst [vmem:[%s177 + $0x6e0] sm:$0xff] %v1165
          %1422 = vst [vmem:[%s177 + $0x6e8] sm:$0xff] %v1166
          %1423 = vst [vmem:[%s177 + $0x6f0] sm:$0xff] %v1167
          %1424 = vst [vmem:[%s177 + $0x6f8] sm:$0xff] %v1168
          %1425 = vst [vmem:[%s177 + $0x700] sm:$0xff] %v1169
          %1426 = vst [vmem:[%s177 + $0x708] sm:$0xff] %v1170
          %1427 = vst [vmem:[%s177 + $0x710] sm:$0xff] %v1171
          %1428 = vst [vmem:[%s177 + $0x718] sm:$0xff] %v1172
          %1429 = vst [vmem:[%s177 + $0x720] sm:$0xff] %v1173
          %1430 = vst [vmem:[%s177 + $0x728] sm:$0xff] %v1174
          %1431 = vst [vmem:[%s177 + $0x730] sm:$0xff] %v1175
          %1432 = vst [vmem:[%s177 + $0x738] sm:$0xff] %v1176
          %1433 = vst [vmem:[%s177 + $0x740] sm:$0xff] %v1177
          %1434 = vst [vmem:[%s177 + $0x748] sm:$0xff] %v1178
          %1435 = vst [vmem:[%s177 + $0x750] sm:$0xff] %v1179
          %1436 = vst [vmem:[%s177 + $0x758] sm:$0xff] %v1180
          %1437 = vst [vmem:[%s177 + $0x760] sm:$0xff] %v1181
          %1438 = vst [vmem:[%s177 + $0x768] sm:$0xff] %v1182
          %1439 = vst [vmem:[%s177 + $0x770] sm:$0xff] %v1183
          %1440 = vst [vmem:[%s177 + $0x778] sm:$0xff] %v1184
          %1441 = vst [vmem:[%s177 + $0x780] sm:$0xff] %v1185
          %1442 = vst [vmem:[%s177 + $0x788] sm:$0xff] %v1186
          %1443 = vst [vmem:[%s177 + $0x790] sm:$0xff] %v1187
          %1444 = vst [vmem:[%s177 + $0x798] sm:$0xff] %v1188
          %1445 = vst [vmem:[%s177 + $0x7a0] sm:$0xff] %v1189
          %1446 = vst [vmem:[%s177 + $0x7a8] sm:$0xff] %v1190
          %1447 = vst [vmem:[%s177 + $0x7b0] sm:$0xff] %v1191
          %1448 = vst [vmem:[%s177 + $0x7b8] sm:$0xff] %v1192
          %1449 = vst [vmem:[%s177 + $0x7c0] sm:$0xff] %v1193
          %1450 = vst [vmem:[%s177 + $0x7c8] sm:$0xff] %v1194
          %1451 = vst [vmem:[%s177 + $0x7d0] sm:$0xff] %v1195
          %1452 = vst [vmem:[%s177 + $0x7d8] sm:$0xff] %v1196
          %1453 = vst [vmem:[%s177 + $0x7e0] sm:$0xff] %v1197
          %1454 = vst [vmem:[%s177 + $0x7e8] sm:$0xff] %v1198
          %1455 = vst [vmem:[%s177 + $0x7f0] sm:$0xff] %v1199
          %1456 = vst [vmem:[%s177 + $0x7f8] sm:$0xff] %v1200
        $region40: #{tpu_custom_call.1} parent=27 // pred_fallthru
          _
        %p1457 = pneg %p197
        // Predicated region
        $region41: #{tpu_custom_call.1} parent=27 // pred_check
          _
        $region42: #{tpu_custom_call.1} parent=27 // pred_check_branch
          %1459 = sbr.rel (%p197) target = $region44
        $region43: #{tpu_custom_call.1} parent=27 // pred_region
          %1460 = vst [vmem:[%s177] sm:$0xff] 0.0
          %1461 = vst [vmem:[%s177 + $0x8] sm:$0xff] 0.0
          %1462 = vst [vmem:[%s177 + $0x10] sm:$0xff] 0.0
          %1463 = vst [vmem:[%s177 + $0x18] sm:$0xff] 0.0
          %1464 = vst [vmem:[%s177 + $0x20] sm:$0xff] 0.0
          %1465 = vst [vmem:[%s177 + $0x28] sm:$0xff] 0.0
          %1466 = vst [vmem:[%s177 + $0x30] sm:$0xff] 0.0
          %1467 = vst [vmem:[%s177 + $0x38] sm:$0xff] 0.0
          %1468 = vst [vmem:[%s177 + $0x40] sm:$0xff] 0.0
          %1469 = vst [vmem:[%s177 + $0x48] sm:$0xff] 0.0
          %1470 = vst [vmem:[%s177 + $0x50] sm:$0xff] 0.0
          %1471 = vst [vmem:[%s177 + $0x58] sm:$0xff] 0.0
          %1472 = vst [vmem:[%s177 + $0x60] sm:$0xff] 0.0
          %1473 = vst [vmem:[%s177 + $0x68] sm:$0xff] 0.0
          %1474 = vst [vmem:[%s177 + $0x70] sm:$0xff] 0.0
          %1475 = vst [vmem:[%s177 + $0x78] sm:$0xff] 0.0
          %1476 = vst [vmem:[%s177 + $0x80] sm:$0xff] 0.0
          %1477 = vst [vmem:[%s177 + $0x88] sm:$0xff] 0.0
          %1478 = vst [vmem:[%s177 + $0x90] sm:$0xff] 0.0
          %1479 = vst [vmem:[%s177 + $0x98] sm:$0xff] 0.0
          %1480 = vst [vmem:[%s177 + $0xa0] sm:$0xff] 0.0
          %1481 = vst [vmem:[%s177 + $0xa8] sm:$0xff] 0.0
          %1482 = vst [vmem:[%s177 + $0xb0] sm:$0xff] 0.0
          %1483 = vst [vmem:[%s177 + $0xb8] sm:$0xff] 0.0
          %1484 = vst [vmem:[%s177 + $0xc0] sm:$0xff] 0.0
          %1485 = vst [vmem:[%s177 + $0xc8] sm:$0xff] 0.0
          %1486 = vst [vmem:[%s177 + $0xd0] sm:$0xff] 0.0
          %1487 = vst [vmem:[%s177 + $0xd8] sm:$0xff] 0.0
          %1488 = vst [vmem:[%s177 + $0xe0] sm:$0xff] 0.0
          %1489 = vst [vmem:[%s177 + $0xe8] sm:$0xff] 0.0
          %1490 = vst [vmem:[%s177 + $0xf0] sm:$0xff] 0.0
          %1491 = vst [vmem:[%s177 + $0xf8] sm:$0xff] 0.0
          %1492 = vst [vmem:[%s177 + $0x100] sm:$0xff] 0.0
          %1493 = vst [vmem:[%s177 + $0x108] sm:$0xff] 0.0
          %1494 = vst [vmem:[%s177 + $0x110] sm:$0xff] 0.0
          %1495 = vst [vmem:[%s177 + $0x118] sm:$0xff] 0.0
          %1496 = vst [vmem:[%s177 + $0x120] sm:$0xff] 0.0
          %1497 = vst [vmem:[%s177 + $0x128] sm:$0xff] 0.0
          %1498 = vst [vmem:[%s177 + $0x130] sm:$0xff] 0.0
          %1499 = vst [vmem:[%s177 + $0x138] sm:$0xff] 0.0
          %1500 = vst [vmem:[%s177 + $0x140] sm:$0xff] 0.0
          %1501 = vst [vmem:[%s177 + $0x148] sm:$0xff] 0.0
          %1502 = vst [vmem:[%s177 + $0x150] sm:$0xff] 0.0
          %1503 = vst [vmem:[%s177 + $0x158] sm:$0xff] 0.0
          %1504 = vst [vmem:[%s177 + $0x160] sm:$0xff] 0.0
          %1505 = vst [vmem:[%s177 + $0x168] sm:$0xff] 0.0
          %1506 = vst [vmem:[%s177 + $0x170] sm:$0xff] 0.0
          %1507 = vst [vmem:[%s177 + $0x178] sm:$0xff] 0.0
          %1508 = vst [vmem:[%s177 + $0x180] sm:$0xff] 0.0
          %1509 = vst [vmem:[%s177 + $0x188] sm:$0xff] 0.0
          %1510 = vst [vmem:[%s177 + $0x190] sm:$0xff] 0.0
          %1511 = vst [vmem:[%s177 + $0x198] sm:$0xff] 0.0
          %1512 = vst [vmem:[%s177 + $0x1a0] sm:$0xff] 0.0
          %1513 = vst [vmem:[%s177 + $0x1a8] sm:$0xff] 0.0
          %1514 = vst [vmem:[%s177 + $0x1b0] sm:$0xff] 0.0
          %1515 = vst [vmem:[%s177 + $0x1b8] sm:$0xff] 0.0
          %1516 = vst [vmem:[%s177 + $0x1c0] sm:$0xff] 0.0
          %1517 = vst [vmem:[%s177 + $0x1c8] sm:$0xff] 0.0
          %1518 = vst [vmem:[%s177 + $0x1d0] sm:$0xff] 0.0
          %1519 = vst [vmem:[%s177 + $0x1d8] sm:$0xff] 0.0
          %1520 = vst [vmem:[%s177 + $0x1e0] sm:$0xff] 0.0
          %1521 = vst [vmem:[%s177 + $0x1e8] sm:$0xff] 0.0
          %1522 = vst [vmem:[%s177 + $0x1f0] sm:$0xff] 0.0
          %1523 = vst [vmem:[%s177 + $0x1f8] sm:$0xff] 0.0
          %1524 = vst [vmem:[%s177 + $0x200] sm:$0xff] 0.0
          %1525 = vst [vmem:[%s177 + $0x208] sm:$0xff] 0.0
          %1526 = vst [vmem:[%s177 + $0x210] sm:$0xff] 0.0
          %1527 = vst [vmem:[%s177 + $0x218] sm:$0xff] 0.0
          %1528 = vst [vmem:[%s177 + $0x220] sm:$0xff] 0.0
          %1529 = vst [vmem:[%s177 + $0x228] sm:$0xff] 0.0
          %1530 = vst [vmem:[%s177 + $0x230] sm:$0xff] 0.0
          %1531 = vst [vmem:[%s177 + $0x238] sm:$0xff] 0.0
          %1532 = vst [vmem:[%s177 + $0x240] sm:$0xff] 0.0
          %1533 = vst [vmem:[%s177 + $0x248] sm:$0xff] 0.0
          %1534 = vst [vmem:[%s177 + $0x250] sm:$0xff] 0.0
          %1535 = vst [vmem:[%s177 + $0x258] sm:$0xff] 0.0
          %1536 = vst [vmem:[%s177 + $0x260] sm:$0xff] 0.0
          %1537 = vst [vmem:[%s177 + $0x268] sm:$0xff] 0.0
          %1538 = vst [vmem:[%s177 + $0x270] sm:$0xff] 0.0
          %1539 = vst [vmem:[%s177 + $0x278] sm:$0xff] 0.0
          %1540 = vst [vmem:[%s177 + $0x280] sm:$0xff] 0.0
          %1541 = vst [vmem:[%s177 + $0x288] sm:$0xff] 0.0
          %1542 = vst [vmem:[%s177 + $0x290] sm:$0xff] 0.0
          %1543 = vst [vmem:[%s177 + $0x298] sm:$0xff] 0.0
          %1544 = vst [vmem:[%s177 + $0x2a0] sm:$0xff] 0.0
          %1545 = vst [vmem:[%s177 + $0x2a8] sm:$0xff] 0.0
          %1546 = vst [vmem:[%s177 + $0x2b0] sm:$0xff] 0.0
          %1547 = vst [vmem:[%s177 + $0x2b8] sm:$0xff] 0.0
          %1548 = vst [vmem:[%s177 + $0x2c0] sm:$0xff] 0.0
          %1549 = vst [vmem:[%s177 + $0x2c8] sm:$0xff] 0.0
          %1550 = vst [vmem:[%s177 + $0x2d0] sm:$0xff] 0.0
          %1551 = vst [vmem:[%s177 + $0x2d8] sm:$0xff] 0.0
          %1552 = vst [vmem:[%s177 + $0x2e0] sm:$0xff] 0.0
          %1553 = vst [vmem:[%s177 + $0x2e8] sm:$0xff] 0.0
          %1554 = vst [vmem:[%s177 + $0x2f0] sm:$0xff] 0.0
          %1555 = vst [vmem:[%s177 + $0x2f8] sm:$0xff] 0.0
          %1556 = vst [vmem:[%s177 + $0x300] sm:$0xff] 0.0
          %1557 = vst [vmem:[%s177 + $0x308] sm:$0xff] 0.0
          %1558 = vst [vmem:[%s177 + $0x310] sm:$0xff] 0.0
          %1559 = vst [vmem:[%s177 + $0x318] sm:$0xff] 0.0
          %1560 = vst [vmem:[%s177 + $0x320] sm:$0xff] 0.0
          %1561 = vst [vmem:[%s177 + $0x328] sm:$0xff] 0.0
          %1562 = vst [vmem:[%s177 + $0x330] sm:$0xff] 0.0
          %1563 = vst [vmem:[%s177 + $0x338] sm:$0xff] 0.0
          %1564 = vst [vmem:[%s177 + $0x340] sm:$0xff] 0.0
          %1565 = vst [vmem:[%s177 + $0x348] sm:$0xff] 0.0
          %1566 = vst [vmem:[%s177 + $0x350] sm:$0xff] 0.0
          %1567 = vst [vmem:[%s177 + $0x358] sm:$0xff] 0.0
          %1568 = vst [vmem:[%s177 + $0x360] sm:$0xff] 0.0
          %1569 = vst [vmem:[%s177 + $0x368] sm:$0xff] 0.0
          %1570 = vst [vmem:[%s177 + $0x370] sm:$0xff] 0.0
          %1571 = vst [vmem:[%s177 + $0x378] sm:$0xff] 0.0
          %1572 = vst [vmem:[%s177 + $0x380] sm:$0xff] 0.0
          %1573 = vst [vmem:[%s177 + $0x388] sm:$0xff] 0.0
          %1574 = vst [vmem:[%s177 + $0x390] sm:$0xff] 0.0
          %1575 = vst [vmem:[%s177 + $0x398] sm:$0xff] 0.0
          %1576 = vst [vmem:[%s177 + $0x3a0] sm:$0xff] 0.0
          %1577 = vst [vmem:[%s177 + $0x3a8] sm:$0xff] 0.0
          %1578 = vst [vmem:[%s177 + $0x3b0] sm:$0xff] 0.0
          %1579 = vst [vmem:[%s177 + $0x3b8] sm:$0xff] 0.0
          %1580 = vst [vmem:[%s177 + $0x3c0] sm:$0xff] 0.0
          %1581 = vst [vmem:[%s177 + $0x3c8] sm:$0xff] 0.0
          %1582 = vst [vmem:[%s177 + $0x3d0] sm:$0xff] 0.0
          %1583 = vst [vmem:[%s177 + $0x3d8] sm:$0xff] 0.0
          %1584 = vst [vmem:[%s177 + $0x3e0] sm:$0xff] 0.0
          %1585 = vst [vmem:[%s177 + $0x3e8] sm:$0xff] 0.0
          %1586 = vst [vmem:[%s177 + $0x3f0] sm:$0xff] 0.0
          %1587 = vst [vmem:[%s177 + $0x3f8] sm:$0xff] 0.0
          %1588 = vst [vmem:[%s177 + $0x400] sm:$0xff] 0.0
          %1589 = vst [vmem:[%s177 + $0x408] sm:$0xff] 0.0
          %1590 = vst [vmem:[%s177 + $0x410] sm:$0xff] 0.0
          %1591 = vst [vmem:[%s177 + $0x418] sm:$0xff] 0.0
          %1592 = vst [vmem:[%s177 + $0x420] sm:$0xff] 0.0
          %1593 = vst [vmem:[%s177 + $0x428] sm:$0xff] 0.0
          %1594 = vst [vmem:[%s177 + $0x430] sm:$0xff] 0.0
          %1595 = vst [vmem:[%s177 + $0x438] sm:$0xff] 0.0
          %1596 = vst [vmem:[%s177 + $0x440] sm:$0xff] 0.0
          %1597 = vst [vmem:[%s177 + $0x448] sm:$0xff] 0.0
          %1598 = vst [vmem:[%s177 + $0x450] sm:$0xff] 0.0
          %1599 = vst [vmem:[%s177 + $0x458] sm:$0xff] 0.0
          %1600 = vst [vmem:[%s177 + $0x460] sm:$0xff] 0.0
          %1601 = vst [vmem:[%s177 + $0x468] sm:$0xff] 0.0
          %1602 = vst [vmem:[%s177 + $0x470] sm:$0xff] 0.0
          %1603 = vst [vmem:[%s177 + $0x478] sm:$0xff] 0.0
          %1604 = vst [vmem:[%s177 + $0x480] sm:$0xff] 0.0
          %1605 = vst [vmem:[%s177 + $0x488] sm:$0xff] 0.0
          %1606 = vst [vmem:[%s177 + $0x490] sm:$0xff] 0.0
          %1607 = vst [vmem:[%s177 + $0x498] sm:$0xff] 0.0
          %1608 = vst [vmem:[%s177 + $0x4a0] sm:$0xff] 0.0
          %1609 = vst [vmem:[%s177 + $0x4a8] sm:$0xff] 0.0
          %1610 = vst [vmem:[%s177 + $0x4b0] sm:$0xff] 0.0
          %1611 = vst [vmem:[%s177 + $0x4b8] sm:$0xff] 0.0
          %1612 = vst [vmem:[%s177 + $0x4c0] sm:$0xff] 0.0
          %1613 = vst [vmem:[%s177 + $0x4c8] sm:$0xff] 0.0
          %1614 = vst [vmem:[%s177 + $0x4d0] sm:$0xff] 0.0
          %1615 = vst [vmem:[%s177 + $0x4d8] sm:$0xff] 0.0
          %1616 = vst [vmem:[%s177 + $0x4e0] sm:$0xff] 0.0
          %1617 = vst [vmem:[%s177 + $0x4e8] sm:$0xff] 0.0
          %1618 = vst [vmem:[%s177 + $0x4f0] sm:$0xff] 0.0
          %1619 = vst [vmem:[%s177 + $0x4f8] sm:$0xff] 0.0
          %1620 = vst [vmem:[%s177 + $0x500] sm:$0xff] 0.0
          %1621 = vst [vmem:[%s177 + $0x508] sm:$0xff] 0.0
          %1622 = vst [vmem:[%s177 + $0x510] sm:$0xff] 0.0
          %1623 = vst [vmem:[%s177 + $0x518] sm:$0xff] 0.0
          %1624 = vst [vmem:[%s177 + $0x520] sm:$0xff] 0.0
          %1625 = vst [vmem:[%s177 + $0x528] sm:$0xff] 0.0
          %1626 = vst [vmem:[%s177 + $0x530] sm:$0xff] 0.0
          %1627 = vst [vmem:[%s177 + $0x538] sm:$0xff] 0.0
          %1628 = vst [vmem:[%s177 + $0x540] sm:$0xff] 0.0
          %1629 = vst [vmem:[%s177 + $0x548] sm:$0xff] 0.0
          %1630 = vst [vmem:[%s177 + $0x550] sm:$0xff] 0.0
          %1631 = vst [vmem:[%s177 + $0x558] sm:$0xff] 0.0
          %1632 = vst [vmem:[%s177 + $0x560] sm:$0xff] 0.0
          %1633 = vst [vmem:[%s177 + $0x568] sm:$0xff] 0.0
          %1634 = vst [vmem:[%s177 + $0x570] sm:$0xff] 0.0
          %1635 = vst [vmem:[%s177 + $0x578] sm:$0xff] 0.0
          %1636 = vst [vmem:[%s177 + $0x580] sm:$0xff] 0.0
          %1637 = vst [vmem:[%s177 + $0x588] sm:$0xff] 0.0
          %1638 = vst [vmem:[%s177 + $0x590] sm:$0xff] 0.0
          %1639 = vst [vmem:[%s177 + $0x598] sm:$0xff] 0.0
          %1640 = vst [vmem:[%s177 + $0x5a0] sm:$0xff] 0.0
          %1641 = vst [vmem:[%s177 + $0x5a8] sm:$0xff] 0.0
          %1642 = vst [vmem:[%s177 + $0x5b0] sm:$0xff] 0.0
          %1643 = vst [vmem:[%s177 + $0x5b8] sm:$0xff] 0.0
          %1644 = vst [vmem:[%s177 + $0x5c0] sm:$0xff] 0.0
          %1645 = vst [vmem:[%s177 + $0x5c8] sm:$0xff] 0.0
          %1646 = vst [vmem:[%s177 + $0x5d0] sm:$0xff] 0.0
          %1647 = vst [vmem:[%s177 + $0x5d8] sm:$0xff] 0.0
          %1648 = vst [vmem:[%s177 + $0x5e0] sm:$0xff] 0.0
          %1649 = vst [vmem:[%s177 + $0x5e8] sm:$0xff] 0.0
          %1650 = vst [vmem:[%s177 + $0x5f0] sm:$0xff] 0.0
          %1651 = vst [vmem:[%s177 + $0x5f8] sm:$0xff] 0.0
          %1652 = vst [vmem:[%s177 + $0x600] sm:$0xff] 0.0
          %1653 = vst [vmem:[%s177 + $0x608] sm:$0xff] 0.0
          %1654 = vst [vmem:[%s177 + $0x610] sm:$0xff] 0.0
          %1655 = vst [vmem:[%s177 + $0x618] sm:$0xff] 0.0
          %1656 = vst [vmem:[%s177 + $0x620] sm:$0xff] 0.0
          %1657 = vst [vmem:[%s177 + $0x628] sm:$0xff] 0.0
          %1658 = vst [vmem:[%s177 + $0x630] sm:$0xff] 0.0
          %1659 = vst [vmem:[%s177 + $0x638] sm:$0xff] 0.0
          %1660 = vst [vmem:[%s177 + $0x640] sm:$0xff] 0.0
          %1661 = vst [vmem:[%s177 + $0x648] sm:$0xff] 0.0
          %1662 = vst [vmem:[%s177 + $0x650] sm:$0xff] 0.0
          %1663 = vst [vmem:[%s177 + $0x658] sm:$0xff] 0.0
          %1664 = vst [vmem:[%s177 + $0x660] sm:$0xff] 0.0
          %1665 = vst [vmem:[%s177 + $0x668] sm:$0xff] 0.0
          %1666 = vst [vmem:[%s177 + $0x670] sm:$0xff] 0.0
          %1667 = vst [vmem:[%s177 + $0x678] sm:$0xff] 0.0
          %1668 = vst [vmem:[%s177 + $0x680] sm:$0xff] 0.0
          %1669 = vst [vmem:[%s177 + $0x688] sm:$0xff] 0.0
          %1670 = vst [vmem:[%s177 + $0x690] sm:$0xff] 0.0
          %1671 = vst [vmem:[%s177 + $0x698] sm:$0xff] 0.0
          %1672 = vst [vmem:[%s177 + $0x6a0] sm:$0xff] 0.0
          %1673 = vst [vmem:[%s177 + $0x6a8] sm:$0xff] 0.0
          %1674 = vst [vmem:[%s177 + $0x6b0] sm:$0xff] 0.0
          %1675 = vst [vmem:[%s177 + $0x6b8] sm:$0xff] 0.0
          %1676 = vst [vmem:[%s177 + $0x6c0] sm:$0xff] 0.0
          %1677 = vst [vmem:[%s177 + $0x6c8] sm:$0xff] 0.0
          %1678 = vst [vmem:[%s177 + $0x6d0] sm:$0xff] 0.0
          %1679 = vst [vmem:[%s177 + $0x6d8] sm:$0xff] 0.0
          %1680 = vst [vmem:[%s177 + $0x6e0] sm:$0xff] 0.0
          %1681 = vst [vmem:[%s177 + $0x6e8] sm:$0xff] 0.0
          %1682 = vst [vmem:[%s177 + $0x6f0] sm:$0xff] 0.0
          %1683 = vst [vmem:[%s177 + $0x6f8] sm:$0xff] 0.0
          %1684 = vst [vmem:[%s177 + $0x700] sm:$0xff] 0.0
          %1685 = vst [vmem:[%s177 + $0x708] sm:$0xff] 0.0
          %1686 = vst [vmem:[%s177 + $0x710] sm:$0xff] 0.0
          %1687 = vst [vmem:[%s177 + $0x718] sm:$0xff] 0.0
          %1688 = vst [vmem:[%s177 + $0x720] sm:$0xff] 0.0
          %1689 = vst [vmem:[%s177 + $0x728] sm:$0xff] 0.0
          %1690 = vst [vmem:[%s177 + $0x730] sm:$0xff] 0.0
          %1691 = vst [vmem:[%s177 + $0x738] sm:$0xff] 0.0
          %1692 = vst [vmem:[%s177 + $0x740] sm:$0xff] 0.0
          %1693 = vst [vmem:[%s177 + $0x748] sm:$0xff] 0.0
          %1694 = vst [vmem:[%s177 + $0x750] sm:$0xff] 0.0
          %1695 = vst [vmem:[%s177 + $0x758] sm:$0xff] 0.0
          %1696 = vst [vmem:[%s177 + $0x760] sm:$0xff] 0.0
          %1697 = vst [vmem:[%s177 + $0x768] sm:$0xff] 0.0
          %1698 = vst [vmem:[%s177 + $0x770] sm:$0xff] 0.0
          %1699 = vst [vmem:[%s177 + $0x778] sm:$0xff] 0.0
          %1700 = vst [vmem:[%s177 + $0x780] sm:$0xff] 0.0
          %1701 = vst [vmem:[%s177 + $0x788] sm:$0xff] 0.0
          %1702 = vst [vmem:[%s177 + $0x790] sm:$0xff] 0.0
          %1703 = vst [vmem:[%s177 + $0x798] sm:$0xff] 0.0
          %1704 = vst [vmem:[%s177 + $0x7a0] sm:$0xff] 0.0
          %1705 = vst [vmem:[%s177 + $0x7a8] sm:$0xff] 0.0
          %1706 = vst [vmem:[%s177 + $0x7b0] sm:$0xff] 0.0
          %1707 = vst [vmem:[%s177 + $0x7b8] sm:$0xff] 0.0
          %1708 = vst [vmem:[%s177 + $0x7c0] sm:$0xff] 0.0
          %1709 = vst [vmem:[%s177 + $0x7c8] sm:$0xff] 0.0
          %1710 = vst [vmem:[%s177 + $0x7d0] sm:$0xff] 0.0
          %1711 = vst [vmem:[%s177 + $0x7d8] sm:$0xff] 0.0
          %1712 = vst [vmem:[%s177 + $0x7e0] sm:$0xff] 0.0
          %1713 = vst [vmem:[%s177 + $0x7e8] sm:$0xff] 0.0
          %1714 = vst [vmem:[%s177 + $0x7f0] sm:$0xff] 0.0
          %1715 = vst [vmem:[%s177 + $0x7f8] sm:$0xff] 0.0
        $region44: #{tpu_custom_call.1} parent=27 // pred_fallthru
          _
        %s1716 = sand.u32 %s92, 1
        %s1717 = scalar_lea.sflag [#allocation4], %s1716
        %s1718 = sand.u32 %s92, 1
        %s1719 = smul.addr %s1718, 2048
        %s1720 = scalar_lea.vmem [#allocation7], %s1719
        // Predicated region
        $region45: #{tpu_custom_call.1} parent=27 // pred_check
          %p1721 = pneg %p102
        $region46: #{tpu_custom_call.1} parent=27 // pred_check_branch
          %1723 = sbr.rel (%p1721) target = $region48
        $region47: #{tpu_custom_call.1} parent=27 // pred_region
          %s1724 = smul.u32 32, %s22
          %s1725 = smul.u32 8, %s23
          %s1726 = ssub.s32 129, %s1724
          %p1727 = scmp.lt.s32.totalorder %s1726, 32
          %s1728 = scalar_select %p1727, %s1726, 32
          %s1729 = smul.u32 128, %s1728
          %s1730 = smul.u32 %s1729, 8
          %s1732 = ssub.s32 32768, %s1730
          %1733 = vsyncadd %s1717, %s1732
          %p1734 = scmp.ne.s32.totalorder 0, %s1730
          %s1735 = smul.addr %s1724, 8
          %s1736 = sadd.s32 %s1725, %s1735
          %s1737 = smul.addr %s1736, 128
          %s1738 = scalar_lea.hbm %s2, %s1737
          %s1739 = smul.u32 64, %s1728
          %s1740 = sshll.u32 %s1720, 4
          %s1741 = int_to_ptr.vmem [resolvable:$true] %s1740
          %s1742 = sshll.u32 %s1739, 4
          %1746 = dma.vmem_to_hbm [thread:$0]  (%p1734), %s1741, %s1742, %s1738, %s1717, 1024, 1024, 64
        $region48: #{tpu_custom_call.1} parent=27 // pred_fallthru
          _
      $region28: #{tpu_custom_call.1} parent=5 // pred_fallthru
        _
      %p1747 = scmp.le.s32.totalorder 2, %s13
      // Predicated region
      $region49: #{tpu_custom_call.1} parent=5 // pred_check
        %p1748 = pneg %p1747
      $region50: #{tpu_custom_call.1} parent=5 // pred_check_branch
        %1750 = sbr.rel (%p1748) target = $region52
      $region51: #{tpu_custom_call.1} parent=5 // pred_region
        %s1751 = ssub.s32 %s13, 2
        // Predicated region
        $region53: #{tpu_custom_call.1} parent=51 // pred_check
          %p1752 = pneg %p108
        $region54: #{tpu_custom_call.1} parent=51 // pred_check_branch
          %1754 = sbr.rel (%p1752) target = $region56
        $region55: #{tpu_custom_call.1} parent=51 // pred_region
          %s1755 = sand.u32 %s93, 1
          %s1756 = scalar_lea.sflag [#allocation4], %s1755
          %s1757 = sand.u32 %s93, 1
          %s1758 = smul.addr %s1757, 2048
          %s1759 = scalar_lea.vmem [#allocation7], %s1758
          %1760 = dma.done %s1756, 32768
        $region56: #{tpu_custom_call.1} parent=51 // pred_fallthru
          _
      $region52: #{tpu_custom_call.1} parent=5 // pred_fallthru
        _
    $region6: #{tpu_custom_call.1} parent=1 // loop_footer
      %s17 = sadd.s32 1, %s13
    $region7: #{tpu_custom_call.1} parent=1 // loop_footer_branch
      %12 = sbr.rel target = $region3
    $region8: #{tpu_custom_call.1} parent=1 // loop_exit
      _
    %1761 = vsyncpa [#allocation3], 1
    %s1762 = scalar_lea.sflag [#allocation3], 1
    %1763 = vsyncpa %s1762, 1
    %1764 = vsyncpa [#allocation6], 1
    %1765 = vsyncpa [#allocation4], 1
    %s1766 = scalar_lea.sflag [#allocation4], 1
    %1767 = vsyncpa %s1766, 1

</llo_original>
